<compile_context>
chip_gen: v7x
topology: tpu7x:2x2x1
jax: 0.10.0
libtpu: 0.0.40
codegen_flags: <defaults>
</compile_context>

<pallas_src>
import numpy as np
import jax
import jax.numpy as jnp
from jax import lax
from jax.experimental import pallas as pl
from jax.experimental.pallas import tpu as pltpu


def _lstm_kernel(x_ref, wih_ref, whh_ref, bg_ref, lenm1_ref, wlin_ref, blin_ref,
                 h0_ref, c0_ref, out_ref, xproj_scr):
    T, Bb, D = x_ref.shape
    H = h0_ref.shape[-1]

    # ---- preamble: one bf16 MXU matmul projects ALL timesteps of this batch
    # block; bias folded in; single contiguous slab store to the bf16 scratch.
    x2d = x_ref[...].reshape(T * Bb, D).astype(jnp.bfloat16)
    proj = (jnp.dot(x2d, wih_ref[...], preferred_element_type=jnp.float32)
            + bg_ref[...])                                    # (T*Bb, 4H) f32
    xproj_scr[...] = proj.reshape(T, Bb, 4 * H).astype(xproj_scr.dtype)

    lenm1 = lenm1_ref[...]                                    # (Bb, 1) int32, hoisted
    whh = whh_ref[...]                                        # (H, 4H) bf16, loop-invariant

    def step(t, carry):
        h, c, last = carry
        # single recurrent bf16 MXU matmul per step, f32 accumulation
        gates = (xproj_scr[t].astype(jnp.float32)
                 + jnp.dot(h.astype(jnp.bfloat16), whh,
                           preferred_element_type=jnp.float32))
        # H % 128 == 0 -> each gate slice is a whole lane tile (free slicing).
        # sigmoid(x) = 0.5*tanh(0.5*x) + 0.5 : one EUP op, no divide.
        i_g = 0.5 * jnp.tanh(0.5 * gates[:, 0 * H:1 * H]) + 0.5
        f_g = 0.5 * jnp.tanh(0.5 * gates[:, 1 * H:2 * H]) + 0.5
        g_g = jnp.tanh(gates[:, 2 * H:3 * H])
        o_g = 0.5 * jnp.tanh(0.5 * gates[:, 3 * H:4 * H]) + 0.5
        c_new = f_g * c + i_g * g_g
        h_new = o_g * jnp.tanh(c_new)
        # capture h at the last *valid* timestep of each sequence
        last = jnp.where(lenm1 == t, h_new, last)
        return (h_new, c_new, last)

    h0 = h0_ref[...]
    init = (h0, c0_ref[...], jnp.zeros_like(h0))
    _, _, last = lax.fori_loop(0, T, step, init, unroll=min(T, 8))

    # ---- epilogue: final Linear ----
    if wlin_ref.shape[0] == 1 and out_ref.shape[-1] == 1:
        # O == 1: VPU multiply + lane reduce, no MXU push/drain needed.
        out = jnp.sum(last * wlin_ref[...], axis=1, keepdims=True) + blin_ref[...]
    else:
        # general O: wrapper passes W_lin already transposed to (H, O)
        out = (jnp.dot(last, wlin_ref[...], preferred_element_type=jnp.float32)
               + blin_ref[...])
    out_ref[...] = out.astype(out_ref.dtype)


def full_lstm_forward(x_btd, lengths, params, h0, c0, *, batch_block=None):
    """x_btd: (B, T, D) float32, lengths: (B,) int (all >= 1).  Returns (B, O)."""
    B, T, D = x_btd.shape
    H = h0.shape[-1]
    O = params["w_lin"].shape[0]
    Bb = min(B, 8) if batch_block is None else batch_block
    assert B % Bb == 0 and Bb % 8 == 0, "batch block must be a multiple of 8"

    # Time-major layout so the input projection is one matmul per batch block
    # and per-timestep slabs are full sublane tiles.  x is small; the
    # transpose is negligible.
    x_tbd = jnp.transpose(x_btd, (1, 0, 2))                   # (T, B, D)
    wih_t = jnp.transpose(params["w_ih"]).astype(jnp.bfloat16)  # (D, 4H) bf16
    whh_t = jnp.transpose(params["w_hh"]).astype(jnp.bfloat16)  # (H, 4H) bf16
    bg = (params["b_ih"] + params["b_hh"]).reshape(1, 4 * H).astype(jnp.float32)
    # O == 1: keep W_lin as a (1, H) f32 row for the VPU-reduce epilogue.
    wlin_k = params["w_lin"] if O == 1 else jnp.transpose(params["w_lin"])
    blin = params["b_lin"].reshape(1, O)
    lenm1 = (lengths.astype(jnp.int32) - 1).reshape(B, 1)

    grid = (B // Bb,)
    in_specs = [
        pl.BlockSpec((T, Bb, D), lambda b: (0, b, 0)),        # x (time-major)
        pl.BlockSpec(wih_t.shape, lambda b: (0, 0)),          # W_ih^T (bf16)
        pl.BlockSpec(whh_t.shape, lambda b: (0, 0)),          # W_hh^T (bf16)
        pl.BlockSpec(bg.shape, lambda b: (0, 0)),             # folded gate bias
        pl.BlockSpec((Bb, 1), lambda b: (b, 0)),              # lengths - 1
        pl.BlockSpec(wlin_k.shape, lambda b: (0, 0)),         # W_lin
        pl.BlockSpec(blin.shape, lambda b: (0, 0)),           # b_lin
        pl.BlockSpec((Bb, H), lambda b: (b, 0)),              # h0
        pl.BlockSpec((Bb, H), lambda b: (b, 0)),              # c0
    ]
    out_specs = pl.BlockSpec((Bb, O), lambda b: (b, 0))

    return pl.pallas_call(
        _lstm_kernel,
        out_shape=jax.ShapeDtypeStruct((B, O), jnp.float32),
        grid=grid,
        in_specs=in_specs,
        out_specs=out_specs,
        # bf16 x-projection scratch: half the VMEM residency of f32; T-chunk
        # (emit_pipeline / extra grid axis) before this approaches v7x's 64 MiB.
        scratch_shapes=[pltpu.VMEM((T, Bb, 4 * H), jnp.bfloat16)],
        compiler_params=pltpu.CompilerParams(
            dimension_semantics=("parallel",),
            vmem_limit_bytes=32 * 1024 * 1024),
    )(x_tbd, wih_t, whh_t, bg, lenm1, wlin_k, blin, h0, c0)


def full_lstm_reference(x_btd, lengths, params, h0, c0):
    """Pure-JAX reference matching nn.LSTM(batch_first) + last_timestep + Linear."""
    B, T, D = x_btd.shape
    H = h0.shape[-1]
    wih, whh = params["w_ih"], params["w_hh"]
    b = params["b_ih"] + params["b_hh"]

    def step(carry, x_t):
        h, c = carry
        gates = x_t @ wih.T + h @ whh.T + b
        i_g = jax.nn.sigmoid(gates[:, 0 * H:1 * H])
        f_g = jax.nn.sigmoid(gates[:, 1 * H:2 * H])
        g_g = jnp.tanh(gates[:, 2 * H:3 * H])
        o_g = jax.nn.sigmoid(gates[:, 3 * H:4 * H])
        c_new = f_g * c + i_g * g_g
        h_new = o_g * jnp.tanh(c_new)
        return (h_new, c_new), h_new

    (_, _), hs = jax.lax.scan(step, (h0, c0), jnp.transpose(x_btd, (1, 0, 2)))
    hs = jnp.transpose(hs, (1, 0, 2))                         # (B, T, H)
    last = hs[jnp.arange(B), lengths - 1]                     # (B, H)
    return last @ params["w_lin"].T + params["b_lin"]


if __name__ == "__main__":
    # Small shapes consistent with the module's forward.  B multiple of 8 and
    # H multiple of 128 keep every tile sublane/lane aligned.
    B, T, D, H, O = 8, 8, 8, 128, 1

    key = jax.random.PRNGKey(0)
    keys = jax.random.split(key, 10)

    # Deterministic parameter init (PyTorch-style U(-1/sqrt(H), 1/sqrt(H))).
    k = 1.0 / np.sqrt(H)
    params = {
        "w_ih": jax.random.uniform(keys[0], (4 * H, D), jnp.float32, -k, k),
        "w_hh": jax.random.uniform(keys[1], (4 * H, H), jnp.float32, -k, k),
        "b_ih": jax.random.uniform(keys[2], (4 * H,), jnp.float32, -k, k),
        "b_hh": jax.random.uniform(keys[3], (4 * H,), jnp.float32, -k, k),
        "w_lin": jax.random.uniform(keys[4], (O, H), jnp.float32, -k, k),
        "b_lin": jax.random.uniform(keys[5], (O,), jnp.float32, -k, k),
    }

    # init_hidden() uses randn -> deterministic normal initial states here
    # (nb_layers == 1, so the leading layer axis is squeezed).
    h0 = jax.random.normal(keys[6], (B, H), jnp.float32)
    c0 = jax.random.normal(keys[7], (B, H), jnp.float32)

    # Inputs: padded batch + per-sequence lengths (all >= 1, as pack_padded
    # requires).
    x = jax.random.normal(keys[8], (B, T, D), jnp.float32)
    lengths = jnp.array([8, 5, 3, 6, 1, 7, 2, 4], dtype=jnp.int32)

    y_hat = jax.block_until_ready(full_lstm_forward(x, lengths, params, h0, c0))
    y_ref = jax.block_until_ready(
        full_lstm_reference(x, lengths, params, h0, c0))

    # Tolerance widened slightly vs. the f32 version: the kernel now runs the
    # matmuls in bf16 (f32 accumulation) and stores the x-projection in bf16.
    np.testing.assert_allclose(np.asarray(y_hat), np.asarray(y_ref),
                               rtol=5e-3, atol=5e-3)
    print("KERNEL_OK")
</pallas_src>

<mosaic_0001>
module attributes {stable_mosaic.version = 11 : i64} {
  func.func @_lstm_kernel(%arg0: i32, %arg1: memref<8x8x8xf32, #tpu.memory_space<vmem>>, %arg2: memref<8x512xbf16, #tpu.memory_space<vmem>>, %arg3: memref<128x512xbf16, #tpu.memory_space<vmem>>, %arg4: memref<1x512xf32, #tpu.memory_space<vmem>>, %arg5: memref<8x1xi32, #tpu.memory_space<vmem>>, %arg6: memref<1x128xf32, #tpu.memory_space<vmem>>, %arg7: memref<1x1xf32, #tpu.memory_space<vmem>>, %arg8: memref<8x128xf32, #tpu.memory_space<vmem>>, %arg9: memref<8x128xf32, #tpu.memory_space<vmem>>, %arg10: memref<8x1xf32, #tpu.memory_space<vmem>>, %arg11: memref<8x8x512xbf16, #tpu.memory_space<vmem>>) attributes {dimension_semantics = [#tpu.dimension_semantics<parallel>], iteration_bounds = array<i64: 1>, scalar_prefetch = 0 : i64, scratch_operands = 1 : i64, tpu.core_type = #tpu.core_type<tc>, window_params = [{transform_indices = @transform_0, window_bounds = array<i64: 8, 8, 8>}, {pipeline_mode = #tpu.pipeline_mode<synchronous>, transform_indices = @transform_1, window_bounds = array<i64: 8, 512>}, {pipeline_mode = #tpu.pipeline_mode<synchronous>, transform_indices = @transform_2, window_bounds = array<i64: 128, 512>}, {pipeline_mode = #tpu.pipeline_mode<synchronous>, transform_indices = @transform_3, window_bounds = array<i64: 1, 512>}, {transform_indices = @transform_4, window_bounds = array<i64: 8, 1>}, {pipeline_mode = #tpu.pipeline_mode<synchronous>, transform_indices = @transform_5, window_bounds = array<i64: 1, 128>}, {pipeline_mode = #tpu.pipeline_mode<synchronous>, transform_indices = @transform_6, window_bounds = array<i64: 1, 1>}, {transform_indices = @transform_7, window_bounds = array<i64: 8, 128>}, {transform_indices = @transform_8, window_bounds = array<i64: 8, 128>}, {transform_indices = @transform_9, window_bounds = array<i64: 8, 1>}]} {
    %c0 = arith.constant 0 : index
    %c0_0 = arith.constant 0 : index
    %c0_1 = arith.constant 0 : index
    %0 = vector.load %arg1[%c0, %c0_0, %c0_1] : memref<8x8x8xf32, #tpu.memory_space<vmem>>, vector<8x8x8xf32>
    %1 = vector.shape_cast %0 : vector<8x8x8xf32> to vector<64x8xf32>
    %2 = arith.truncf %1 : vector<64x8xf32> to vector<64x8xbf16>
    %c0_2 = arith.constant 0 : index
    %c0_3 = arith.constant 0 : index
    %3 = vector.load %arg2[%c0_2, %c0_3] : memref<8x512xbf16, #tpu.memory_space<vmem>>, vector<8x512xbf16>
    %cst = arith.constant dense<0.000000e+00> : vector<64x512xf32>
    %4 = tpu.matmul %2, %3, %cst {dimension_numbers = #tpu.dot_dimension_numbers<[1], [0], [0], [1], [0, 0, 1, 1], [], []>} : vector<64x8xbf16>, vector<8x512xbf16>, vector<64x512xf32> -> vector<64x512xf32>
    %c0_4 = arith.constant 0 : index
    %c0_5 = arith.constant 0 : index
    %5 = vector.load %arg4[%c0_4, %c0_5] : memref<1x512xf32, #tpu.memory_space<vmem>>, vector<1x512xf32>
    %6 = vector.broadcast %5 : vector<1x512xf32> to vector<64x512xf32>
    %7 = arith.addf %4, %6 : vector<64x512xf32>
    %8 = vector.shape_cast %7 : vector<64x512xf32> to vector<8x8x512xf32>
    %9 = arith.truncf %8 : vector<8x8x512xf32> to vector<8x8x512xbf16>
    %c0_6 = arith.constant 0 : index
    %c0_7 = arith.constant 0 : index
    %c0_8 = arith.constant 0 : index
    %10 = vector.load %arg11[%c0_6, %c0_7, %c0_8] : memref<8x8x512xbf16, #tpu.memory_space<vmem>>, vector<8x8x512xbf16>
    tpu.vector_store %arg11[%c0_6, %c0_7, %c0_8], %9 {strides = array<i32>} : memref<8x8x512xbf16, #tpu.memory_space<vmem>>, vector<8x8x512xbf16>,
    %c0_9 = arith.constant 0 : index
    %c0_10 = arith.constant 0 : index
    %11 = vector.load %arg5[%c0_9, %c0_10] : memref<8x1xi32, #tpu.memory_space<vmem>>, vector<8x1xi32>
    %c0_11 = arith.constant 0 : index
    %c0_12 = arith.constant 0 : index
    %12 = vector.load %arg3[%c0_11, %c0_12] : memref<128x512xbf16, #tpu.memory_space<vmem>>, vector<128x512xbf16>
    %c0_13 = arith.constant 0 : index
    %c0_14 = arith.constant 0 : index
    %13 = vector.load %arg8[%c0_13, %c0_14] : memref<8x128xf32, #tpu.memory_space<vmem>>, vector<8x128xf32>
    %c0_15 = arith.constant 0 : index
    %c0_16 = arith.constant 0 : index
    %14 = vector.load %arg9[%c0_15, %c0_16] : memref<8x128xf32, #tpu.memory_space<vmem>>, vector<8x128xf32>
    %cst_17 = arith.constant 0.000000e+00 : f32
    %15 = vector.broadcast %cst_17 : f32 to vector<8x128xf32>
    %c0_i32 = arith.constant 0 : i32
    %16 = arith.index_cast %c0_i32 : i32 to index
    %c0_18 = arith.constant 0 : index
    %c0_19 = arith.constant 0 : index
    %17 = vector.load %arg11[%16, %c0_18, %c0_19] : memref<8x8x512xbf16, #tpu.memory_space<vmem>>, vector<1x8x512xbf16>
    %18 = vector.shape_cast %17 : vector<1x8x512xbf16> to vector<8x512xbf16>
    %19 = arith.extf %18 : vector<8x512xbf16> to vector<8x512xf32>
    %20 = arith.truncf %13 : vector<8x128xf32> to vector<8x128xbf16>
    %cst_20 = arith.constant dense<0.000000e+00> : vector<8x512xf32>
    %21 = tpu.matmul %20, %12, %cst_20 {dimension_numbers = #tpu.dot_dimension_numbers<[1], [0], [0], [1], [0, 0, 1, 1], [], []>} : vector<8x128xbf16>, vector<128x512xbf16>, vector<8x512xf32> -> vector<8x512xf32>
    %22 = arith.addf %19, %21 : vector<8x512xf32>
    %23 = vector.extract_strided_slice %22 {offsets = [0, 0], sizes = [8, 128], strides = [1, 1]} : vector<8x512xf32> to vector<8x128xf32>
    %cst_21 = arith.constant 5.000000e-01 : f32
    %24 = vector.broadcast %cst_21 : f32 to vector<8x128xf32>
    %25 = arith.mulf %24, %23 : vector<8x128xf32>
    %26 = math.tanh %25 : vector<8x128xf32>
    %cst_22 = arith.constant 5.000000e-01 : f32
    %27 = vector.broadcast %cst_22 : f32 to vector<8x128xf32>
    %28 = arith.mulf %27, %26 : vector<8x128xf32>
    %cst_23 = arith.constant 5.000000e-01 : f32
    %29 = vector.broadcast %cst_23 : f32 to vector<8x128xf32>
    %30 = arith.addf %28, %29 : vector<8x128xf32>
    %31 = vector.extract_strided_slice %22 {offsets = [0, 128], sizes = [8, 128], strides = [1, 1]} : vector<8x512xf32> to vector<8x128xf32>
    %cst_24 = arith.constant 5.000000e-01 : f32
    %32 = vector.broadcast %cst_24 : f32 to vector<8x128xf32>
    %33 = arith.mulf %32, %31 : vector<8x128xf32>
    %34 = math.tanh %33 : vector<8x128xf32>
    %cst_25 = arith.constant 5.000000e-01 : f32
    %35 = vector.broadcast %cst_25 : f32 to vector<8x128xf32>
    %36 = arith.mulf %35, %34 : vector<8x128xf32>
    %cst_26 = arith.constant 5.000000e-01 : f32
    %37 = vector.broadcast %cst_26 : f32 to vector<8x128xf32>
    %38 = arith.addf %36, %37 : vector<8x128xf32>
    %39 = vector.extract_strided_slice %22 {offsets = [0, 256], sizes = [8, 128], strides = [1, 1]} : vector<8x512xf32> to vector<8x128xf32>
    %40 = math.tanh %39 : vector<8x128xf32>
    %41 = vector.extract_strided_slice %22 {offsets = [0, 384], sizes = [8, 128], strides = [1, 1]} : vector<8x512xf32> to vector<8x128xf32>
    %cst_27 = arith.constant 5.000000e-01 : f32
    %42 = vector.broadcast %cst_27 : f32 to vector<8x128xf32>
    %43 = arith.mulf %42, %41 : vector<8x128xf32>
    %44 = math.tanh %43 : vector<8x128xf32>
    %cst_28 = arith.constant 5.000000e-01 : f32
    %45 = vector.broadcast %cst_28 : f32 to vector<8x128xf32>
    %46 = arith.mulf %45, %44 : vector<8x128xf32>
    %cst_29 = arith.constant 5.000000e-01 : f32
    %47 = vector.broadcast %cst_29 : f32 to vector<8x128xf32>
    %48 = arith.addf %46, %47 : vector<8x128xf32>
    %49 = arith.mulf %38, %14 : vector<8x128xf32>
    %50 = arith.mulf %30, %40 : vector<8x128xf32>
    %51 = arith.addf %49, %50 : vector<8x128xf32>
    %52 = math.tanh %51 : vector<8x128xf32>
    %53 = arith.mulf %48, %52 : vector<8x128xf32>
    %54 = vector.broadcast %c0_i32 : i32 to vector<8x1xi32>
    %55 = arith.cmpi eq, %11, %54 : vector<8x1xi32>
    %56 = vector.shape_cast %55 : vector<8x1xi1> to vector<8x1xi1>
    %57 = vector.broadcast %56 : vector<8x1xi1> to vector<8x128xi1>
    %58 = arith.select %57, %53, %15 : vector<8x128xi1>, vector<8x128xf32>
    %c1_i32 = arith.constant 1 : i32
    %59 = arith.index_cast %c1_i32 : i32 to index
    %c0_30 = arith.constant 0 : index
    %c0_31 = arith.constant 0 : index
    %60 = vector.load %arg11[%59, %c0_30, %c0_31] : memref<8x8x512xbf16, #tpu.memory_space<vmem>>, vector<1x8x512xbf16>
    %61 = vector.shape_cast %60 : vector<1x8x512xbf16> to vector<8x512xbf16>
    %62 = arith.extf %61 : vector<8x512xbf16> to vector<8x512xf32>
    %63 = arith.truncf %53 : vector<8x128xf32> to vector<8x128xbf16>
    %cst_32 = arith.constant dense<0.000000e+00> : vector<8x512xf32>
    %64 = tpu.matmul %63, %12, %cst_32 {dimension_numbers = #tpu.dot_dimension_numbers<[1], [0], [0], [1], [0, 0, 1, 1], [], []>} : vector<8x128xbf16>, vector<128x512xbf16>, vector<8x512xf32> -> vector<8x512xf32>
    %65 = arith.addf %62, %64 : vector<8x512xf32>
    %66 = vector.extract_strided_slice %65 {offsets = [0, 0], sizes = [8, 128], strides = [1, 1]} : vector<8x512xf32> to vector<8x128xf32>
    %cst_33 = arith.constant 5.000000e-01 : f32
    %67 = vector.broadcast %cst_33 : f32 to vector<8x128xf32>
    %68 = arith.mulf %67, %66 : vector<8x128xf32>
    %69 = math.tanh %68 : vector<8x128xf32>
    %cst_34 = arith.constant 5.000000e-01 : f32
    %70 = vector.broadcast %cst_34 : f32 to vector<8x128xf32>
    %71 = arith.mulf %70, %69 : vector<8x128xf32>
    %cst_35 = arith.constant 5.000000e-01 : f32
    %72 = vector.broadcast %cst_35 : f32 to vector<8x128xf32>
    %73 = arith.addf %71, %72 : vector<8x128xf32>
    %74 = vector.extract_strided_slice %65 {offsets = [0, 128], sizes = [8, 128], strides = [1, 1]} : vector<8x512xf32> to vector<8x128xf32>
    %cst_36 = arith.constant 5.000000e-01 : f32
    %75 = vector.broadcast %cst_36 : f32 to vector<8x128xf32>
    %76 = arith.mulf %75, %74 : vector<8x128xf32>
    %77 = math.tanh %76 : vector<8x128xf32>
    %cst_37 = arith.constant 5.000000e-01 : f32
    %78 = vector.broadcast %cst_37 : f32 to vector<8x128xf32>
    %79 = arith.mulf %78, %77 : vector<8x128xf32>
    %cst_38 = arith.constant 5.000000e-01 : f32
    %80 = vector.broadcast %cst_38 : f32 to vector<8x128xf32>
    %81 = arith.addf %79, %80 : vector<8x128xf32>
    %82 = vector.extract_strided_slice %65 {offsets = [0, 256], sizes = [8, 128], strides = [1, 1]} : vector<8x512xf32> to vector<8x128xf32>
    %83 = math.tanh %82 : vector<8x128xf32>
    %84 = vector.extract_strided_slice %65 {offsets = [0, 384], sizes = [8, 128], strides = [1, 1]} : vector<8x512xf32> to vector<8x128xf32>
    %cst_39 = arith.constant 5.000000e-01 : f32
    %85 = vector.broadcast %cst_39 : f32 to vector<8x128xf32>
    %86 = arith.mulf %85, %84 : vector<8x128xf32>
    %87 = math.tanh %86 : vector<8x128xf32>
    %cst_40 = arith.constant 5.000000e-01 : f32
    %88 = vector.broadcast %cst_40 : f32 to vector<8x128xf32>
    %89 = arith.mulf %88, %87 : vector<8x128xf32>
    %cst_41 = arith.constant 5.000000e-01 : f32
    %90 = vector.broadcast %cst_41 : f32 to vector<8x128xf32>
    %91 = arith.addf %89, %90 : vector<8x128xf32>
    %92 = arith.mulf %81, %51 : vector<8x128xf32>
    %93 = arith.mulf %73, %83 : vector<8x128xf32>
    %94 = arith.addf %92, %93 : vector<8x128xf32>
    %95 = math.tanh %94 : vector<8x128xf32>
    %96 = arith.mulf %91, %95 : vector<8x128xf32>
    %97 = vector.broadcast %c1_i32 : i32 to vector<8x1xi32>
    %98 = arith.cmpi eq, %11, %97 : vector<8x1xi32>
    %99 = vector.shape_cast %98 : vector<8x1xi1> to vector<8x1xi1>
    %100 = vector.broadcast %99 : vector<8x1xi1> to vector<8x128xi1>
    %101 = arith.select %100, %96, %58 : vector<8x128xi1>, vector<8x128xf32>
    %c2_i32 = arith.constant 2 : i32
    %102 = arith.index_cast %c2_i32 : i32 to index
    %c0_42 = arith.constant 0 : index
    %c0_43 = arith.constant 0 : index
    %103 = vector.load %arg11[%102, %c0_42, %c0_43] : memref<8x8x512xbf16, #tpu.memory_space<vmem>>, vector<1x8x512xbf16>
    %104 = vector.shape_cast %103 : vector<1x8x512xbf16> to vector<8x512xbf16>
    %105 = arith.extf %104 : vector<8x512xbf16> to vector<8x512xf32>
    %106 = arith.truncf %96 : vector<8x128xf32> to vector<8x128xbf16>
    %cst_44 = arith.constant dense<0.000000e+00> : vector<8x512xf32>
    %107 = tpu.matmul %106, %12, %cst_44 {dimension_numbers = #tpu.dot_dimension_numbers<[1], [0], [0], [1], [0, 0, 1, 1], [], []>} : vector<8x128xbf16>, vector<128x512xbf16>, vector<8x512xf32> -> vector<8x512xf32>
    %108 = arith.addf %105, %107 : vector<8x512xf32>
    %109 = vector.extract_strided_slice %108 {offsets = [0, 0], sizes = [8, 128], strides = [1, 1]} : vector<8x512xf32> to vector<8x128xf32>
    %cst_45 = arith.constant 5.000000e-01 : f32
    %110 = vector.broadcast %cst_45 : f32 to vector<8x128xf32>
    %111 = arith.mulf %110, %109 : vector<8x128xf32>
    %112 = math.tanh %111 : vector<8x128xf32>
    %cst_46 = arith.constant 5.000000e-01 : f32
    %113 = vector.broadcast %cst_46 : f32 to vector<8x128xf32>
    %114 = arith.mulf %113, %112 : vector<8x128xf32>
    %cst_47 = arith.constant 5.000000e-01 : f32
    %115 = vector.broadcast %cst_47 : f32 to vector<8x128xf32>
    %116 = arith.addf %114, %115 : vector<8x128xf32>
    %117 = vector.extract_strided_slice %108 {offsets = [0, 128], sizes = [8, 128], strides = [1, 1]} : vector<8x512xf32> to vector<8x128xf32>
    %cst_48 = arith.constant 5.000000e-01 : f32
    %118 = vector.broadcast %cst_48 : f32 to vector<8x128xf32>
    %119 = arith.mulf %118, %117 : vector<8x128xf32>
    %120 = math.tanh %119 : vector<8x128xf32>
    %cst_49 = arith.constant 5.000000e-01 : f32
    %121 = vector.broadcast %cst_49 : f32 to vector<8x128xf32>
    %122 = arith.mulf %121, %120 : vector<8x128xf32>
    %cst_50 = arith.constant 5.000000e-01 : f32
    %123 = vector.broadcast %cst_50 : f32 to vector<8x128xf32>
    %124 = arith.addf %122, %123 : vector<8x128xf32>
    %125 = vector.extract_strided_slice %108 {offsets = [0, 256], sizes = [8, 128], strides = [1, 1]} : vector<8x512xf32> to vector<8x128xf32>
    %126 = math.tanh %125 : vector<8x128xf32>
    %127 = vector.extract_strided_slice %108 {offsets = [0, 384], sizes = [8, 128], strides = [1, 1]} : vector<8x512xf32> to vector<8x128xf32>
    %cst_51 = arith.constant 5.000000e-01 : f32
    %128 = vector.broadcast %cst_51 : f32 to vector<8x128xf32>
    %129 = arith.mulf %128, %127 : vector<8x128xf32>
    %130 = math.tanh %129 : vector<8x128xf32>
    %cst_52 = arith.constant 5.000000e-01 : f32
    %131 = vector.broadcast %cst_52 : f32 to vector<8x128xf32>
    %132 = arith.mulf %131, %130 : vector<8x128xf32>
    %cst_53 = arith.constant 5.000000e-01 : f32
    %133 = vector.broadcast %cst_53 : f32 to vector<8x128xf32>
    %134 = arith.addf %132, %133 : vector<8x128xf32>
    %135 = arith.mulf %124, %94 : vector<8x128xf32>
    %136 = arith.mulf %116, %126 : vector<8x128xf32>
    %137 = arith.addf %135, %136 : vector<8x128xf32>
    %138 = math.tanh %137 : vector<8x128xf32>
    %139 = arith.mulf %134, %138 : vector<8x128xf32>
    %140 = vector.broadcast %c2_i32 : i32 to vector<8x1xi32>
    %141 = arith.cmpi eq, %11, %140 : vector<8x1xi32>
    %142 = vector.shape_cast %141 : vector<8x1xi1> to vector<8x1xi1>
    %143 = vector.broadcast %142 : vector<8x1xi1> to vector<8x128xi1>
    %144 = arith.select %143, %139, %101 : vector<8x128xi1>, vector<8x128xf32>
    %c3_i32 = arith.constant 3 : i32
    %145 = arith.index_cast %c3_i32 : i32 to index
    %c0_54 = arith.constant 0 : index
    %c0_55 = arith.constant 0 : index
    %146 = vector.load %arg11[%145, %c0_54, %c0_55] : memref<8x8x512xbf16, #tpu.memory_space<vmem>>, vector<1x8x512xbf16>
    %147 = vector.shape_cast %146 : vector<1x8x512xbf16> to vector<8x512xbf16>
    %148 = arith.extf %147 : vector<8x512xbf16> to vector<8x512xf32>
    %149 = arith.truncf %139 : vector<8x128xf32> to vector<8x128xbf16>
    %cst_56 = arith.constant dense<0.000000e+00> : vector<8x512xf32>
    %150 = tpu.matmul %149, %12, %cst_56 {dimension_numbers = #tpu.dot_dimension_numbers<[1], [0], [0], [1], [0, 0, 1, 1], [], []>} : vector<8x128xbf16>, vector<128x512xbf16>, vector<8x512xf32> -> vector<8x512xf32>
    %151 = arith.addf %148, %150 : vector<8x512xf32>
    %152 = vector.extract_strided_slice %151 {offsets = [0, 0], sizes = [8, 128], strides = [1, 1]} : vector<8x512xf32> to vector<8x128xf32>
    %cst_57 = arith.constant 5.000000e-01 : f32
    %153 = vector.broadcast %cst_57 : f32 to vector<8x128xf32>
    %154 = arith.mulf %153, %152 : vector<8x128xf32>
    %155 = math.tanh %154 : vector<8x128xf32>
    %cst_58 = arith.constant 5.000000e-01 : f32
    %156 = vector.broadcast %cst_58 : f32 to vector<8x128xf32>
    %157 = arith.mulf %156, %155 : vector<8x128xf32>
    %cst_59 = arith.constant 5.000000e-01 : f32
    %158 = vector.broadcast %cst_59 : f32 to vector<8x128xf32>
    %159 = arith.addf %157, %158 : vector<8x128xf32>
    %160 = vector.extract_strided_slice %151 {offsets = [0, 128], sizes = [8, 128], strides = [1, 1]} : vector<8x512xf32> to vector<8x128xf32>
    %cst_60 = arith.constant 5.000000e-01 : f32
    %161 = vector.broadcast %cst_60 : f32 to vector<8x128xf32>
    %162 = arith.mulf %161, %160 : vector<8x128xf32>
    %163 = math.tanh %162 : vector<8x128xf32>
    %cst_61 = arith.constant 5.000000e-01 : f32
    %164 = vector.broadcast %cst_61 : f32 to vector<8x128xf32>
    %165 = arith.mulf %164, %163 : vector<8x128xf32>
    %cst_62 = arith.constant 5.000000e-01 : f32
    %166 = vector.broadcast %cst_62 : f32 to vector<8x128xf32>
    %167 = arith.addf %165, %166 : vector<8x128xf32>
    %168 = vector.extract_strided_slice %151 {offsets = [0, 256], sizes = [8, 128], strides = [1, 1]} : vector<8x512xf32> to vector<8x128xf32>
    %169 = math.tanh %168 : vector<8x128xf32>
    %170 = vector.extract_strided_slice %151 {offsets = [0, 384], sizes = [8, 128], strides = [1, 1]} : vector<8x512xf32> to vector<8x128xf32>
    %cst_63 = arith.constant 5.000000e-01 : f32
    %171 = vector.broadcast %cst_63 : f32 to vector<8x128xf32>
    %172 = arith.mulf %171, %170 : vector<8x128xf32>
    %173 = math.tanh %172 : vector<8x128xf32>
    %cst_64 = arith.constant 5.000000e-01 : f32
    %174 = vector.broadcast %cst_64 : f32 to vector<8x128xf32>
    %175 = arith.mulf %174, %173 : vector<8x128xf32>
    %cst_65 = arith.constant 5.000000e-01 : f32
    %176 = vector.broadcast %cst_65 : f32 to vector<8x128xf32>
    %177 = arith.addf %175, %176 : vector<8x128xf32>
    %178 = arith.mulf %167, %137 : vector<8x128xf32>
    %179 = arith.mulf %159, %169 : vector<8x128xf32>
    %180 = arith.addf %178, %179 : vector<8x128xf32>
    %181 = math.tanh %180 : vector<8x128xf32>
    %182 = arith.mulf %177, %181 : vector<8x128xf32>
    %183 = vector.broadcast %c3_i32 : i32 to vector<8x1xi32>
    %184 = arith.cmpi eq, %11, %183 : vector<8x1xi32>
    %185 = vector.shape_cast %184 : vector<8x1xi1> to vector<8x1xi1>
    %186 = vector.broadcast %185 : vector<8x1xi1> to vector<8x128xi1>
    %187 = arith.select %186, %182, %144 : vector<8x128xi1>, vector<8x128xf32>
    %c4_i32 = arith.constant 4 : i32
    %188 = arith.index_cast %c4_i32 : i32 to index
    %c0_66 = arith.constant 0 : index
    %c0_67 = arith.constant 0 : index
    %189 = vector.load %arg11[%188, %c0_66, %c0_67] : memref<8x8x512xbf16, #tpu.memory_space<vmem>>, vector<1x8x512xbf16>
    %190 = vector.shape_cast %189 : vector<1x8x512xbf16> to vector<8x512xbf16>
    %191 = arith.extf %190 : vector<8x512xbf16> to vector<8x512xf32>
    %192 = arith.truncf %182 : vector<8x128xf32> to vector<8x128xbf16>
    %cst_68 = arith.constant dense<0.000000e+00> : vector<8x512xf32>
    %193 = tpu.matmul %192, %12, %cst_68 {dimension_numbers = #tpu.dot_dimension_numbers<[1], [0], [0], [1], [0, 0, 1, 1], [], []>} : vector<8x128xbf16>, vector<128x512xbf16>, vector<8x512xf32> -> vector<8x512xf32>
    %194 = arith.addf %191, %193 : vector<8x512xf32>
    %195 = vector.extract_strided_slice %194 {offsets = [0, 0], sizes = [8, 128], strides = [1, 1]} : vector<8x512xf32> to vector<8x128xf32>
    %cst_69 = arith.constant 5.000000e-01 : f32
    %196 = vector.broadcast %cst_69 : f32 to vector<8x128xf32>
    %197 = arith.mulf %196, %195 : vector<8x128xf32>
    %198 = math.tanh %197 : vector<8x128xf32>
    %cst_70 = arith.constant 5.000000e-01 : f32
    %199 = vector.broadcast %cst_70 : f32 to vector<8x128xf32>
    %200 = arith.mulf %199, %198 : vector<8x128xf32>
    %cst_71 = arith.constant 5.000000e-01 : f32
    %201 = vector.broadcast %cst_71 : f32 to vector<8x128xf32>
    %202 = arith.addf %200, %201 : vector<8x128xf32>
    %203 = vector.extract_strided_slice %194 {offsets = [0, 128], sizes = [8, 128], strides = [1, 1]} : vector<8x512xf32> to vector<8x128xf32>
    %cst_72 = arith.constant 5.000000e-01 : f32
    %204 = vector.broadcast %cst_72 : f32 to vector<8x128xf32>
    %205 = arith.mulf %204, %203 : vector<8x128xf32>
    %206 = math.tanh %205 : vector<8x128xf32>
    %cst_73 = arith.constant 5.000000e-01 : f32
    %207 = vector.broadcast %cst_73 : f32 to vector<8x128xf32>
    %208 = arith.mulf %207, %206 : vector<8x128xf32>
    %cst_74 = arith.constant 5.000000e-01 : f32
    %209 = vector.broadcast %cst_74 : f32 to vector<8x128xf32>
    %210 = arith.addf %208, %209 : vector<8x128xf32>
    %211 = vector.extract_strided_slice %194 {offsets = [0, 256], sizes = [8, 128], strides = [1, 1]} : vector<8x512xf32> to vector<8x128xf32>
    %212 = math.tanh %211 : vector<8x128xf32>
    %213 = vector.extract_strided_slice %194 {offsets = [0, 384], sizes = [8, 128], strides = [1, 1]} : vector<8x512xf32> to vector<8x128xf32>
    %cst_75 = arith.constant 5.000000e-01 : f32
    %214 = vector.broadcast %cst_75 : f32 to vector<8x128xf32>
    %215 = arith.mulf %214, %213 : vector<8x128xf32>
    %216 = math.tanh %215 : vector<8x128xf32>
    %cst_76 = arith.constant 5.000000e-01 : f32
    %217 = vector.broadcast %cst_76 : f32 to vector<8x128xf32>
    %218 = arith.mulf %217, %216 : vector<8x128xf32>
    %cst_77 = arith.constant 5.000000e-01 : f32
    %219 = vector.broadcast %cst_77 : f32 to vector<8x128xf32>
    %220 = arith.addf %218, %219 : vector<8x128xf32>
    %221 = arith.mulf %210, %180 : vector<8x128xf32>
    %222 = arith.mulf %202, %212 : vector<8x128xf32>
    %223 = arith.addf %221, %222 : vector<8x128xf32>
    %224 = math.tanh %223 : vector<8x128xf32>
    %225 = arith.mulf %220, %224 : vector<8x128xf32>
    %226 = vector.broadcast %c4_i32 : i32 to vector<8x1xi32>
    %227 = arith.cmpi eq, %11, %226 : vector<8x1xi32>
    %228 = vector.shape_cast %227 : vector<8x1xi1> to vector<8x1xi1>
    %229 = vector.broadcast %228 : vector<8x1xi1> to vector<8x128xi1>
    %230 = arith.select %229, %225, %187 : vector<8x128xi1>, vector<8x128xf32>
    %c5_i32 = arith.constant 5 : i32
    %231 = arith.index_cast %c5_i32 : i32 to index
    %c0_78 = arith.constant 0 : index
    %c0_79 = arith.constant 0 : index
    %232 = vector.load %arg11[%231, %c0_78, %c0_79] : memref<8x8x512xbf16, #tpu.memory_space<vmem>>, vector<1x8x512xbf16>
    %233 = vector.shape_cast %232 : vector<1x8x512xbf16> to vector<8x512xbf16>
    %234 = arith.extf %233 : vector<8x512xbf16> to vector<8x512xf32>
    %235 = arith.truncf %225 : vector<8x128xf32> to vector<8x128xbf16>
    %cst_80 = arith.constant dense<0.000000e+00> : vector<8x512xf32>
    %236 = tpu.matmul %235, %12, %cst_80 {dimension_numbers = #tpu.dot_dimension_numbers<[1], [0], [0], [1], [0, 0, 1, 1], [], []>} : vector<8x128xbf16>, vector<128x512xbf16>, vector<8x512xf32> -> vector<8x512xf32>
    %237 = arith.addf %234, %236 : vector<8x512xf32>
    %238 = vector.extract_strided_slice %237 {offsets = [0, 0], sizes = [8, 128], strides = [1, 1]} : vector<8x512xf32> to vector<8x128xf32>
    %cst_81 = arith.constant 5.000000e-01 : f32
    %239 = vector.broadcast %cst_81 : f32 to vector<8x128xf32>
    %240 = arith.mulf %239, %238 : vector<8x128xf32>
    %241 = math.tanh %240 : vector<8x128xf32>
    %cst_82 = arith.constant 5.000000e-01 : f32
    %242 = vector.broadcast %cst_82 : f32 to vector<8x128xf32>
    %243 = arith.mulf %242, %241 : vector<8x128xf32>
    %cst_83 = arith.constant 5.000000e-01 : f32
    %244 = vector.broadcast %cst_83 : f32 to vector<8x128xf32>
    %245 = arith.addf %243, %244 : vector<8x128xf32>
    %246 = vector.extract_strided_slice %237 {offsets = [0, 128], sizes = [8, 128], strides = [1, 1]} : vector<8x512xf32> to vector<8x128xf32>
    %cst_84 = arith.constant 5.000000e-01 : f32
    %247 = vector.broadcast %cst_84 : f32 to vector<8x128xf32>
    %248 = arith.mulf %247, %246 : vector<8x128xf32>
    %249 = math.tanh %248 : vector<8x128xf32>
    %cst_85 = arith.constant 5.000000e-01 : f32
    %250 = vector.broadcast %cst_85 : f32 to vector<8x128xf32>
    %251 = arith.mulf %250, %249 : vector<8x128xf32>
    %cst_86 = arith.constant 5.000000e-01 : f32
    %252 = vector.broadcast %cst_86 : f32 to vector<8x128xf32>
    %253 = arith.addf %251, %252 : vector<8x128xf32>
    %254 = vector.extract_strided_slice %237 {offsets = [0, 256], sizes = [8, 128], strides = [1, 1]} : vector<8x512xf32> to vector<8x128xf32>
    %255 = math.tanh %254 : vector<8x128xf32>
    %256 = vector.extract_strided_slice %237 {offsets = [0, 384], sizes = [8, 128], strides = [1, 1]} : vector<8x512xf32> to vector<8x128xf32>
    %cst_87 = arith.constant 5.000000e-01 : f32
    %257 = vector.broadcast %cst_87 : f32 to vector<8x128xf32>
    %258 = arith.mulf %257, %256 : vector<8x128xf32>
    %259 = math.tanh %258 : vector<8x128xf32>
    %cst_88 = arith.constant 5.000000e-01 : f32
    %260 = vector.broadcast %cst_88 : f32 to vector<8x128xf32>
    %261 = arith.mulf %260, %259 : vector<8x128xf32>
    %cst_89 = arith.constant 5.000000e-01 : f32
    %262 = vector.broadcast %cst_89 : f32 to vector<8x128xf32>
    %263 = arith.addf %261, %262 : vector<8x128xf32>
    %264 = arith.mulf %253, %223 : vector<8x128xf32>
    %265 = arith.mulf %245, %255 : vector<8x128xf32>
    %266 = arith.addf %264, %265 : vector<8x128xf32>
    %267 = math.tanh %266 : vector<8x128xf32>
    %268 = arith.mulf %263, %267 : vector<8x128xf32>
    %269 = vector.broadcast %c5_i32 : i32 to vector<8x1xi32>
    %270 = arith.cmpi eq, %11, %269 : vector<8x1xi32>
    %271 = vector.shape_cast %270 : vector<8x1xi1> to vector<8x1xi1>
    %272 = vector.broadcast %271 : vector<8x1xi1> to vector<8x128xi1>
    %273 = arith.select %272, %268, %230 : vector<8x128xi1>, vector<8x128xf32>
    %c6_i32 = arith.constant 6 : i32
    %274 = arith.index_cast %c6_i32 : i32 to index
    %c0_90 = arith.constant 0 : index
    %c0_91 = arith.constant 0 : index
    %275 = vector.load %arg11[%274, %c0_90, %c0_91] : memref<8x8x512xbf16, #tpu.memory_space<vmem>>, vector<1x8x512xbf16>
    %276 = vector.shape_cast %275 : vector<1x8x512xbf16> to vector<8x512xbf16>
    %277 = arith.extf %276 : vector<8x512xbf16> to vector<8x512xf32>
    %278 = arith.truncf %268 : vector<8x128xf32> to vector<8x128xbf16>
    %cst_92 = arith.constant dense<0.000000e+00> : vector<8x512xf32>
    %279 = tpu.matmul %278, %12, %cst_92 {dimension_numbers = #tpu.dot_dimension_numbers<[1], [0], [0], [1], [0, 0, 1, 1], [], []>} : vector<8x128xbf16>, vector<128x512xbf16>, vector<8x512xf32> -> vector<8x512xf32>
    %280 = arith.addf %277, %279 : vector<8x512xf32>
    %281 = vector.extract_strided_slice %280 {offsets = [0, 0], sizes = [8, 128], strides = [1, 1]} : vector<8x512xf32> to vector<8x128xf32>
    %cst_93 = arith.constant 5.000000e-01 : f32
    %282 = vector.broadcast %cst_93 : f32 to vector<8x128xf32>
    %283 = arith.mulf %282, %281 : vector<8x128xf32>
    %284 = math.tanh %283 : vector<8x128xf32>
    %cst_94 = arith.constant 5.000000e-01 : f32
    %285 = vector.broadcast %cst_94 : f32 to vector<8x128xf32>
    %286 = arith.mulf %285, %284 : vector<8x128xf32>
    %cst_95 = arith.constant 5.000000e-01 : f32
    %287 = vector.broadcast %cst_95 : f32 to vector<8x128xf32>
    %288 = arith.addf %286, %287 : vector<8x128xf32>
    %289 = vector.extract_strided_slice %280 {offsets = [0, 128], sizes = [8, 128], strides = [1, 1]} : vector<8x512xf32> to vector<8x128xf32>
    %cst_96 = arith.constant 5.000000e-01 : f32
    %290 = vector.broadcast %cst_96 : f32 to vector<8x128xf32>
    %291 = arith.mulf %290, %289 : vector<8x128xf32>
    %292 = math.tanh %291 : vector<8x128xf32>
    %cst_97 = arith.constant 5.000000e-01 : f32
    %293 = vector.broadcast %cst_97 : f32 to vector<8x128xf32>
    %294 = arith.mulf %293, %292 : vector<8x128xf32>
    %cst_98 = arith.constant 5.000000e-01 : f32
    %295 = vector.broadcast %cst_98 : f32 to vector<8x128xf32>
    %296 = arith.addf %294, %295 : vector<8x128xf32>
    %297 = vector.extract_strided_slice %280 {offsets = [0, 256], sizes = [8, 128], strides = [1, 1]} : vector<8x512xf32> to vector<8x128xf32>
    %298 = math.tanh %297 : vector<8x128xf32>
    %299 = vector.extract_strided_slice %280 {offsets = [0, 384], sizes = [8, 128], strides = [1, 1]} : vector<8x512xf32> to vector<8x128xf32>
    %cst_99 = arith.constant 5.000000e-01 : f32
    %300 = vector.broadcast %cst_99 : f32 to vector<8x128xf32>
    %301 = arith.mulf %300, %299 : vector<8x128xf32>
    %302 = math.tanh %301 : vector<8x128xf32>
    %cst_100 = arith.constant 5.000000e-01 : f32
    %303 = vector.broadcast %cst_100 : f32 to vector<8x128xf32>
    %304 = arith.mulf %303, %302 : vector<8x128xf32>
    %cst_101 = arith.constant 5.000000e-01 : f32
    %305 = vector.broadcast %cst_101 : f32 to vector<8x128xf32>
    %306 = arith.addf %304, %305 : vector<8x128xf32>
    %307 = arith.mulf %296, %266 : vector<8x128xf32>
    %308 = arith.mulf %288, %298 : vector<8x128xf32>
    %309 = arith.addf %307, %308 : vector<8x128xf32>
    %310 = math.tanh %309 : vector<8x128xf32>
    %311 = arith.mulf %306, %310 : vector<8x128xf32>
    %312 = vector.broadcast %c6_i32 : i32 to vector<8x1xi32>
    %313 = arith.cmpi eq, %11, %312 : vector<8x1xi32>
    %314 = vector.shape_cast %313 : vector<8x1xi1> to vector<8x1xi1>
    %315 = vector.broadcast %314 : vector<8x1xi1> to vector<8x128xi1>
    %316 = arith.select %315, %311, %273 : vector<8x128xi1>, vector<8x128xf32>
    %c7_i32 = arith.constant 7 : i32
    %317 = arith.index_cast %c7_i32 : i32 to index
    %c0_102 = arith.constant 0 : index
    %c0_103 = arith.constant 0 : index
    %318 = vector.load %arg11[%317, %c0_102, %c0_103] : memref<8x8x512xbf16, #tpu.memory_space<vmem>>, vector<1x8x512xbf16>
    %319 = vector.shape_cast %318 : vector<1x8x512xbf16> to vector<8x512xbf16>
    %320 = arith.extf %319 : vector<8x512xbf16> to vector<8x512xf32>
    %321 = arith.truncf %311 : vector<8x128xf32> to vector<8x128xbf16>
    %cst_104 = arith.constant dense<0.000000e+00> : vector<8x512xf32>
    %322 = tpu.matmul %321, %12, %cst_104 {dimension_numbers = #tpu.dot_dimension_numbers<[1], [0], [0], [1], [0, 0, 1, 1], [], []>} : vector<8x128xbf16>, vector<128x512xbf16>, vector<8x512xf32> -> vector<8x512xf32>
    %323 = arith.addf %320, %322 : vector<8x512xf32>
    %324 = vector.extract_strided_slice %323 {offsets = [0, 0], sizes = [8, 128], strides = [1, 1]} : vector<8x512xf32> to vector<8x128xf32>
    %cst_105 = arith.constant 5.000000e-01 : f32
    %325 = vector.broadcast %cst_105 : f32 to vector<8x128xf32>
    %326 = arith.mulf %325, %324 : vector<8x128xf32>
    %327 = math.tanh %326 : vector<8x128xf32>
    %cst_106 = arith.constant 5.000000e-01 : f32
    %328 = vector.broadcast %cst_106 : f32 to vector<8x128xf32>
    %329 = arith.mulf %328, %327 : vector<8x128xf32>
    %cst_107 = arith.constant 5.000000e-01 : f32
    %330 = vector.broadcast %cst_107 : f32 to vector<8x128xf32>
    %331 = arith.addf %329, %330 : vector<8x128xf32>
    %332 = vector.extract_strided_slice %323 {offsets = [0, 128], sizes = [8, 128], strides = [1, 1]} : vector<8x512xf32> to vector<8x128xf32>
    %cst_108 = arith.constant 5.000000e-01 : f32
    %333 = vector.broadcast %cst_108 : f32 to vector<8x128xf32>
    %334 = arith.mulf %333, %332 : vector<8x128xf32>
    %335 = math.tanh %334 : vector<8x128xf32>
    %cst_109 = arith.constant 5.000000e-01 : f32
    %336 = vector.broadcast %cst_109 : f32 to vector<8x128xf32>
    %337 = arith.mulf %336, %335 : vector<8x128xf32>
    %cst_110 = arith.constant 5.000000e-01 : f32
    %338 = vector.broadcast %cst_110 : f32 to vector<8x128xf32>
    %339 = arith.addf %337, %338 : vector<8x128xf32>
    %340 = vector.extract_strided_slice %323 {offsets = [0, 256], sizes = [8, 128], strides = [1, 1]} : vector<8x512xf32> to vector<8x128xf32>
    %341 = math.tanh %340 : vector<8x128xf32>
    %342 = vector.extract_strided_slice %323 {offsets = [0, 384], sizes = [8, 128], strides = [1, 1]} : vector<8x512xf32> to vector<8x128xf32>
    %cst_111 = arith.constant 5.000000e-01 : f32
    %343 = vector.broadcast %cst_111 : f32 to vector<8x128xf32>
    %344 = arith.mulf %343, %342 : vector<8x128xf32>
    %345 = math.tanh %344 : vector<8x128xf32>
    %cst_112 = arith.constant 5.000000e-01 : f32
    %346 = vector.broadcast %cst_112 : f32 to vector<8x128xf32>
    %347 = arith.mulf %346, %345 : vector<8x128xf32>
    %cst_113 = arith.constant 5.000000e-01 : f32
    %348 = vector.broadcast %cst_113 : f32 to vector<8x128xf32>
    %349 = arith.addf %347, %348 : vector<8x128xf32>
    %350 = arith.mulf %339, %309 : vector<8x128xf32>
    %351 = arith.mulf %331, %341 : vector<8x128xf32>
    %352 = arith.addf %350, %351 : vector<8x128xf32>
    %353 = math.tanh %352 : vector<8x128xf32>
    %354 = arith.mulf %349, %353 : vector<8x128xf32>
    %355 = vector.broadcast %c7_i32 : i32 to vector<8x1xi32>
    %356 = arith.cmpi eq, %11, %355 : vector<8x1xi32>
    %357 = vector.shape_cast %356 : vector<8x1xi1> to vector<8x1xi1>
    %358 = vector.broadcast %357 : vector<8x1xi1> to vector<8x128xi1>
    %359 = arith.select %358, %354, %316 : vector<8x128xi1>, vector<8x128xf32>
    %c8_i32 = arith.constant 8 : i32
    %c0_114 = arith.constant 0 : index
    %c0_115 = arith.constant 0 : index
    %360 = vector.load %arg6[%c0_114, %c0_115] : memref<1x128xf32, #tpu.memory_space<vmem>>, vector<1x128xf32>
    %361 = vector.broadcast %360 : vector<1x128xf32> to vector<8x128xf32>
    %362 = arith.mulf %359, %361 : vector<8x128xf32>
    %cst_116 = arith.constant dense<0.000000e+00> : vector<8xf32>
    %363 = vector.multi_reduction <add>, %362, %cst_116 [1] : vector<8x128xf32> to vector<8xf32>
    %364 = vector.shape_cast %363 : vector<8xf32> to vector<8x1xf32>
    %c0_117 = arith.constant 0 : index
    %c0_118 = arith.constant 0 : index
    %365 = vector.load %arg7[%c0_117, %c0_118] : memref<1x1xf32, #tpu.memory_space<vmem>>, vector<1x1xf32>
    %366 = vector.broadcast %365 : vector<1x1xf32> to vector<8x1xf32>
    %367 = arith.addf %364, %366 : vector<8x1xf32>
    %c0_119 = arith.constant 0 : index
    %c0_120 = arith.constant 0 : index
    %368 = vector.load %arg10[%c0_119, %c0_120] : memref<8x1xf32, #tpu.memory_space<vmem>>, vector<8x1xf32>
    tpu.vector_store %arg10[%c0_119, %c0_120], %367 {strides = array<i32>} : memref<8x1xf32, #tpu.memory_space<vmem>>, vector<8x1xf32>,
    return
  }
  func.func @transform_0(%arg0: i32) -> (i32, i32, i32) {
    %c0_i32 = arith.constant 0 : i32
    %c0_i32_0 = arith.constant 0 : i32
    %c0_i32_1 = arith.constant 0 : i32
    return %c0_i32, %arg0, %c0_i32_0 : i32, i32, i32
  }
  func.func @transform_1(%arg0: i32) -> (i32, i32) {
    %c0_i32 = arith.constant 0 : i32
    %c0_i32_0 = arith.constant 0 : i32
    %c0_i32_1 = arith.constant 0 : i32
    return %c0_i32, %c0_i32_0 : i32, i32
  }
  func.func @transform_2(%arg0: i32) -> (i32, i32) {
    %c0_i32 = arith.constant 0 : i32
    %c0_i32_0 = arith.constant 0 : i32
    %c0_i32_1 = arith.constant 0 : i32
    return %c0_i32, %c0_i32_0 : i32, i32
  }
  func.func @transform_3(%arg0: i32) -> (i32, i32) {
    %c0_i32 = arith.constant 0 : i32
    %c0_i32_0 = arith.constant 0 : i32
    %c0_i32_1 = arith.constant 0 : i32
    return %c0_i32, %c0_i32_0 : i32, i32
  }
  func.func @transform_4(%arg0: i32) -> (i32, i32) {
    %c0_i32 = arith.constant 0 : i32
    %c0_i32_0 = arith.constant 0 : i32
    return %arg0, %c0_i32 : i32, i32
  }
  func.func @transform_5(%arg0: i32) -> (i32, i32) {
    %c0_i32 = arith.constant 0 : i32
    %c0_i32_0 = arith.constant 0 : i32
    %c0_i32_1 = arith.constant 0 : i32
    return %c0_i32, %c0_i32_0 : i32, i32
  }
  func.func @transform_6(%arg0: i32) -> (i32, i32) {
    %c0_i32 = arith.constant 0 : i32
    %c0_i32_0 = arith.constant 0 : i32
    %c0_i32_1 = arith.constant 0 : i32
    return %c0_i32, %c0_i32_0 : i32, i32
  }
  func.func @transform_7(%arg0: i32) -> (i32, i32) {
    %c0_i32 = arith.constant 0 : i32
    %c0_i32_0 = arith.constant 0 : i32
    return %arg0, %c0_i32 : i32, i32
  }
  func.func @transform_8(%arg0: i32) -> (i32, i32) {
    %c0_i32 = arith.constant 0 : i32
    %c0_i32_0 = arith.constant 0 : i32
    return %arg0, %c0_i32 : i32, i32
  }
  func.func @transform_9(%arg0: i32) -> (i32, i32) {
    %c0_i32 = arith.constant 0 : i32
    %c0_i32_0 = arith.constant 0 : i32
    return %arg0, %c0_i32 : i32, i32
  }
}

</mosaic_0001>

<llo_original>
// kernel: tpu_custom_call.1
$region0: #{tpu_custom_call.1}
  #allocation0 [shape = 'u32[]', space=smem, size = 0x4, offset = 0x4, fixed_abs, tag = 'smem constant byte address 0x4 - core index']
  #allocation1 [shape = 'u32[144,128]{1,0:T(1,128)}', space=vmem, size = 0x12000, scoped, tag = 'internal scratch']
  #allocation2 [shape = 'bf16[8,8,512]{2,1,0:T(8,128)(2,1)}', space=vmem, size = 0x10000, scoped, tag = 'scratch operand']
  #allocation3 [shape = 'f32[1,1]{1,0:T(1,128)S(1)}', space=vmem, size = 0x200, scoped, tag = 'scoped memory for tpu_custom_call.1']
  %s0 = inlined_call_operand.hbm [shape: f32[8,8,8], index: 0, kind: input, shape index: {}]
  %s1 = inlined_call_operand.vmem [shape: bf16[8,512], index: 1, kind: input, shape index: {}]
  %s2 = inlined_call_operand.hbm [shape: bf16[128,512], index: 2, kind: input, shape index: {}]
  %s3 = inlined_call_operand.hbm [shape: f32[1,512], index: 3, kind: input, shape index: {}]
  %s4 = inlined_call_operand.vmem [shape: s32[8,1], index: 4, kind: input, shape index: {}]
  %s5 = inlined_call_operand.vmem [shape: f32[1,128], index: 5, kind: input, shape index: {}]
  %s6 = inlined_call_operand.<no memory space> [shape: f32[1,1], index: 6, kind: input, shape index: {}]
  %s7 = inlined_call_operand.vmem [shape: f32[8,128], index: 7, kind: input, shape index: {}]
  %s8 = inlined_call_operand.vmem [shape: f32[8,128], index: 8, kind: input, shape index: {}]
  %s9 = inlined_call_operand.vmem [shape: f32[8,1], index: 9, kind: output, shape index: {}]
  %s10 = sld [smem:[#allocation0]]
  $region58: #{tpu_custom_call.1} parent=0
    _
  %s12 = ssub.s32 1, %s10
  %s13 = scalar_select 0, %s12, %s10
  %v14 = vstv %s6
  %15 = vst [vmem:[#allocation3] sm:$0x1] %v14
  $region1: #{tpu_custom_call.1} parent=0
    #allocation4 [shape = 'u8[32768]{0}', space=vmem, size = 0x8000, scoped, tag = 'input window, operand 0, single buffered']
    #allocation5 [shape = 's32[1]{0}', space=sflag, size = 0x4, scoped, tag = 'scoped memory for tpu_custom_call.1']
    #allocation6 [shape = 'u8[131072]{0}', space=vmem, size = 0x20000, scoped, tag = 'input window, operand 2, single buffered']
    #allocation7 [shape = 's32[1]{0}', space=sflag, size = 0x4, scoped, tag = 'scoped memory for tpu_custom_call.1']
    #allocation8 [shape = 'u8[2048]{0}', space=vmem, size = 0x800, scoped, tag = 'input window, operand 3, single buffered']
    %16 = vsyncpa [#allocation5], 0
    %17 = vsyncpa [#allocation7], 0
    // Predicated region
    $region2: #{tpu_custom_call.1} parent=1 // pred_check
      _
    $region3: #{tpu_custom_call.1} parent=1 // pred_check_branch
      %19 = sbr.rel (0) target = $region5
    $region4: #{tpu_custom_call.1} parent=1 // pred_region
      %s21 = ssub.s32 1024, 1024
      %22 = vsyncadd [#allocation5], %s21
      %s23 = sshll.u32 [#allocation4], 4
      %s24 = int_to_ptr.vmem [resolvable:$true] %s23
      %29 = dma.hbm_to_vmem [thread:$0]  %s0, 1024, %s24, [#allocation5], 128, 128, 8
    $region5: #{tpu_custom_call.1} parent=1 // pred_fallthru
      _
    // Predicated region
    $region6: #{tpu_custom_call.1} parent=1 // pred_check
      _
    $region7: #{tpu_custom_call.1} parent=1 // pred_check_branch
      %31 = sbr.rel (0) target = $region9
    $region8: #{tpu_custom_call.1} parent=1 // pred_region
      _
    $region9: #{tpu_custom_call.1} parent=1 // pred_fallthru
      _
    // Predicated region
    $region10: #{tpu_custom_call.1} parent=1 // pred_check
      _
    $region11: #{tpu_custom_call.1} parent=1 // pred_check_branch
      %33 = sbr.rel (0) target = $region13
    $region12: #{tpu_custom_call.1} parent=1 // pred_region
      %s35 = ssub.s32 4096, 4096
      %36 = vsyncadd [#allocation7], %s35
      %s37 = sshll.u32 [#allocation6], 4
      %s38 = int_to_ptr.vmem [resolvable:$true] %s37
      %43 = dma.hbm_to_vmem [thread:$0]  %s2, 4096, %s38, [#allocation7], 256, 256, 16
    $region13: #{tpu_custom_call.1} parent=1 // pred_fallthru
      _
    // Predicated region
    $region14: #{tpu_custom_call.1} parent=1 // pred_check
      _
    $region15: #{tpu_custom_call.1} parent=1 // pred_check_branch
      %45 = sbr.rel (0) target = $region17
    $region16: #{tpu_custom_call.1} parent=1 // pred_region
      %s47 = ssub.s32 64, 64
      %48 = vsyncadd [#allocation7], %s47
      %s50 = sshll.u32 [#allocation8], 4
      %s51 = int_to_ptr.vmem [resolvable:$true] %s50
      %53 = dma.hbm_to_vmem [thread:$0]  %s3, 64, %s51, [#allocation7]
    $region17: #{tpu_custom_call.1} parent=1 // pred_fallthru
      _
    // Predicated region
    $region18: #{tpu_custom_call.1} parent=1 // pred_check
      _
    $region19: #{tpu_custom_call.1} parent=1 // pred_check_branch
      %55 = sbr.rel (0) target = $region21
    $region20: #{tpu_custom_call.1} parent=1 // pred_region
      _
    $region21: #{tpu_custom_call.1} parent=1 // pred_fallthru
      _
    // Predicated region
    $region22: #{tpu_custom_call.1} parent=1 // pred_check
      _
    $region23: #{tpu_custom_call.1} parent=1 // pred_check_branch
      %57 = sbr.rel (0) target = $region25
    $region24: #{tpu_custom_call.1} parent=1 // pred_region
      _
    $region25: #{tpu_custom_call.1} parent=1 // pred_fallthru
      _
    // Predicated region
    $region26: #{tpu_custom_call.1} parent=1 // pred_check
      _
    $region27: #{tpu_custom_call.1} parent=1 // pred_check_branch
      %59 = sbr.rel (0) target = $region29
    $region28: #{tpu_custom_call.1} parent=1 // pred_region
      _
    $region29: #{tpu_custom_call.1} parent=1 // pred_fallthru
      _
    // Predicated region
    $region30: #{tpu_custom_call.1} parent=1 // pred_check
      _
    $region31: #{tpu_custom_call.1} parent=1 // pred_check_branch
      %61 = sbr.rel (0) target = $region33
    $region32: #{tpu_custom_call.1} parent=1 // pred_region
      _
    $region33: #{tpu_custom_call.1} parent=1 // pred_fallthru
      _
    // Predicated region
    $region34: #{tpu_custom_call.1} parent=1 // pred_check
      _
    $region35: #{tpu_custom_call.1} parent=1 // pred_check_branch
      %63 = sbr.rel (0) target = $region37
    $region36: #{tpu_custom_call.1} parent=1 // pred_region
      _
    $region37: #{tpu_custom_call.1} parent=1 // pred_fallthru
      _
    // Predicated region
    $region38: #{tpu_custom_call.1} parent=1 // pred_check
      _
    $region39: #{tpu_custom_call.1} parent=1 // pred_check_branch
      %65 = sbr.rel (0) target = $region41
    $region40: #{tpu_custom_call.1} parent=1 // pred_region
      %66 = dma.done [#allocation5], 1024
    $region41: #{tpu_custom_call.1} parent=1 // pred_fallthru
      _
    // Predicated region
    $region42: #{tpu_custom_call.1} parent=1 // pred_check
      _
    $region43: #{tpu_custom_call.1} parent=1 // pred_check_branch
      %68 = sbr.rel (0) target = $region45
    $region44: #{tpu_custom_call.1} parent=1 // pred_region
      %69 = dma.done [#allocation7], 4096
    $region45: #{tpu_custom_call.1} parent=1 // pred_fallthru
      _
    // Predicated region
    $region46: #{tpu_custom_call.1} parent=1 // pred_check
      _
    $region47: #{tpu_custom_call.1} parent=1 // pred_check_branch
      %71 = sbr.rel (0) target = $region49
    $region48: #{tpu_custom_call.1} parent=1 // pred_region
      %72 = dma.done [#allocation7], 64
    $region49: #{tpu_custom_call.1} parent=1 // pred_fallthru
      _
    %v74 = vld [vmem:[#allocation4] sm:$0xff]
    %v75 = vld [vmem:[#allocation4 + $0x8] sm:$0xff]
    %v76 = vld [vmem:[#allocation4 + $0x10] sm:$0xff]
    %v77 = vld [vmem:[#allocation4 + $0x18] sm:$0xff]
    %v78 = vld [vmem:[#allocation4 + $0x20] sm:$0xff]
    %v79 = vld [vmem:[#allocation4 + $0x28] sm:$0xff]
    %v80 = vld [vmem:[#allocation4 + $0x30] sm:$0xff]
    %v81 = vld [vmem:[#allocation4 + $0x38] sm:$0xff]
    %v82 = vpack.c.bf16 %v75, %v74
    %v83 = vpack.c.bf16 %v77, %v76
    %v84 = vpack.c.bf16 %v79, %v78
    %v85 = vpack.c.bf16 %v81, %v80
    %v86 = vld [vmem:[%s1] sm:$0xff]
    %v87 = vld [vmem:[%s1 + $0x8] sm:$0xff]
    %v88 = vld [vmem:[#allocation8] sm:$0xf]
    %v90 = vlaneseq
    %v91 = vshrl.u32 %v90, 7
    %v92 = vsub.s32 0, %v91
    %v93 = vrot.slane %v88, %v92
    %v94 = vlaneseq
    %v95 = vshrl.u32 %v94, 7
    %v96 = vsub.s32 1, %v95
    %v97 = vrot.slane %v88, %v96
    %v98 = vlaneseq
    %v99 = vshrl.u32 %v98, 7
    %v100 = vsub.s32 2, %v99
    %v101 = vrot.slane %v88, %v100
    %v102 = vlaneseq
    %v103 = vshrl.u32 %v102, 7
    %v104 = vsub.s32 3, %v103
    %v105 = vrot.slane %v88, %v104
    %v112 = vunpack.c.l.b16 %v86
    %v113 = vunpack.c.h.b16 %v86
    %v114 = vunpack.c.l.b16 %v87
    %v115 = vunpack.c.h.b16 %v87
    %v116 = vpack.c.b16 %v112, %v112
    %v117 = vpack.c.b16 %v113, %v113
    %v118 = vpack.c.b16 %v114, %v114
    %v119 = vpack.c.b16 %v115, %v115
    %vm120 = vcmask 64512
    %v122 = vsel %vm120, %v82, 0
    %v125 = vsel %vm120, %v83, 0
    %v128 = vsel %vm120, %v84, 0
    %v131 = vsel %vm120, %v85, 0
    %vm133 = vcmask 1043456
    %v135 = vsel %vm133, %v116, 0
    %v138 = vsel %vm133, %v117, 0
    %v141 = vsel %vm133, %v118, 0
    %v144 = vsel %vm133, %v119, 0
    %146 = vmatprep.subr.bf16.mxu0 %v138
    %147 = vmatpush1.bf16.msra.mxu0 %v135
    %148 = vmatprep.subr.bf16.mxu0 0
    %149 = vmatpush1.bf16.msra.mxu0 0
    %150 = vmatprep.subr.bf16.mxu0 0
    %151 = vmatpush1.bf16.msra.mxu0 0
    %152 = vmatprep.subr.bf16.mxu0 0
    %153 = vmatpush1.bf16.msra.mxu0 0
    %154 = vmatprep.subr.bf16.mxu0 0
    %155 = vmatpush1.bf16.msra.mxu0 0
    %156 = vmatprep.subr.bf16.mxu0 0
    %157 = vmatpush1.bf16.msra.mxu0 0
    %158 = vmatprep.subr.bf16.mxu0 0
    %159 = vmatpush1.bf16.msra.mxu0 0
    %160 = vmatprep.subr.bf16.mxu0 0
    %161 = vmatpush1.bf16.msra.mxu0 0
    %162 = vmatprep.subr.bf16.mxu0 0
    %163 = vmatpush1.bf16.msra.mxu0 0
    %164 = vmatprep.subr.bf16.mxu0 0
    %165 = vmatpush1.bf16.msra.mxu0 0
    %166 = vmatprep.subr.bf16.mxu0 0
    %167 = vmatpush1.bf16.msra.mxu0 0
    %168 = vmatprep.subr.bf16.mxu0 0
    %169 = vmatpush1.bf16.msra.mxu0 0
    %170 = vmatprep.subr.bf16.mxu0 0
    %171 = vmatpush1.bf16.msra.mxu0 0
    %172 = vmatprep.subr.bf16.mxu0 0
    %173 = vmatpush1.bf16.msra.mxu0 0
    %174 = vmatprep.subr.bf16.mxu0 0
    %175 = vmatpush1.bf16.msra.mxu0 0
    %176 = vmatprep.subr.bf16.mxu0 0
    %177 = vmatpush1.bf16.msra.mxu0 0
    %178 = vmatprep.mubr.bf16.mxu0 0
    %179 = vmatmul.mubr.bf16.gmra.mrb[0].mxu0 %v122
    %v180 = vpop.f32.mrb[0].mxu0
    %v181 = vadd.f32 %v93, %v180
    %v182 = vpop.f32.mrb[0].mxu0
    %v183 = vadd.f32 %v97, %v182
    %v184 = vpop.f32.mrb[0].mxu0
    %v185 = vadd.f32 %v93, %v184
    %v186 = vpop.f32.mrb[0].mxu0
    %v187 = vadd.f32 %v97, %v186
    %188 = vmatprep.mubr.bf16.mxu0 0
    %189 = vmatmul.mubr.bf16.gmra.mrb[0].mxu0 %v125
    %v190 = vpop.f32.mrb[0].mxu0
    %v191 = vadd.f32 %v93, %v190
    %v192 = vpop.f32.mrb[0].mxu0
    %v193 = vadd.f32 %v97, %v192
    %v194 = vpop.f32.mrb[0].mxu0
    %v195 = vadd.f32 %v93, %v194
    %v196 = vpop.f32.mrb[0].mxu0
    %v197 = vadd.f32 %v97, %v196
    %198 = vmatprep.mubr.bf16.mxu0 0
    %199 = vmatmul.mubr.bf16.gmra.mrb[0].mxu0 %v128
    %v200 = vpop.f32.mrb[0].mxu0
    %v201 = vadd.f32 %v93, %v200
    %v202 = vpop.f32.mrb[0].mxu0
    %v203 = vadd.f32 %v97, %v202
    %v204 = vpop.f32.mrb[0].mxu0
    %v205 = vadd.f32 %v93, %v204
    %v206 = vpop.f32.mrb[0].mxu0
    %v207 = vadd.f32 %v97, %v206
    %208 = vmatprep.mubr.bf16.mxu0 0
    %209 = vmatmul.mubr.bf16.gmra.mrb[0].mxu0 %v131
    %v210 = vpop.f32.mrb[0].mxu0
    %v211 = vadd.f32 %v93, %v210
    %v212 = vpop.f32.mrb[0].mxu0
    %v213 = vadd.f32 %v97, %v212
    %v214 = vpop.f32.mrb[0].mxu0
    %v215 = vadd.f32 %v93, %v214
    %v216 = vpop.f32.mrb[0].mxu0
    %v217 = vadd.f32 %v97, %v216
    %218 = vdwg.mxu0
    %219 = vmatprep.subr.bf16.mxu0 %v144
    %220 = vmatpush1.bf16.msra.mxu0 %v141
    %221 = vmatprep.subr.bf16.mxu0 0
    %222 = vmatpush1.bf16.msra.mxu0 0
    %223 = vmatprep.subr.bf16.mxu0 0
    %224 = vmatpush1.bf16.msra.mxu0 0
    %225 = vmatprep.subr.bf16.mxu0 0
    %226 = vmatpush1.bf16.msra.mxu0 0
    %227 = vmatprep.subr.bf16.mxu0 0
    %228 = vmatpush1.bf16.msra.mxu0 0
    %229 = vmatprep.subr.bf16.mxu0 0
    %230 = vmatpush1.bf16.msra.mxu0 0
    %231 = vmatprep.subr.bf16.mxu0 0
    %232 = vmatpush1.bf16.msra.mxu0 0
    %233 = vmatprep.subr.bf16.mxu0 0
    %234 = vmatpush1.bf16.msra.mxu0 0
    %235 = vmatprep.subr.bf16.mxu0 0
    %236 = vmatpush1.bf16.msra.mxu0 0
    %237 = vmatprep.subr.bf16.mxu0 0
    %238 = vmatpush1.bf16.msra.mxu0 0
    %239 = vmatprep.subr.bf16.mxu0 0
    %240 = vmatpush1.bf16.msra.mxu0 0
    %241 = vmatprep.subr.bf16.mxu0 0
    %242 = vmatpush1.bf16.msra.mxu0 0
    %243 = vmatprep.subr.bf16.mxu0 0
    %244 = vmatpush1.bf16.msra.mxu0 0
    %245 = vmatprep.subr.bf16.mxu0 0
    %246 = vmatpush1.bf16.msra.mxu0 0
    %247 = vmatprep.subr.bf16.mxu0 0
    %248 = vmatpush1.bf16.msra.mxu0 0
    %249 = vmatprep.subr.bf16.mxu0 0
    %250 = vmatpush1.bf16.msra.mxu0 0
    %251 = vmatprep.mubr.bf16.mxu0 0
    %252 = vmatmul.mubr.bf16.gmra.mrb[0].mxu0 %v122
    %v253 = vpop.f32.mrb[0].mxu0
    %v254 = vadd.f32 %v101, %v253
    %v255 = vpop.f32.mrb[0].mxu0
    %v256 = vadd.f32 %v105, %v255
    %v257 = vpop.f32.mrb[0].mxu0
    %v258 = vadd.f32 %v101, %v257
    %v259 = vpop.f32.mrb[0].mxu0
    %v260 = vadd.f32 %v105, %v259
    %261 = vmatprep.mubr.bf16.mxu0 0
    %262 = vmatmul.mubr.bf16.gmra.mrb[0].mxu0 %v125
    %v263 = vpop.f32.mrb[0].mxu0
    %v264 = vadd.f32 %v101, %v263
    %v265 = vpop.f32.mrb[0].mxu0
    %v266 = vadd.f32 %v105, %v265
    %v267 = vpop.f32.mrb[0].mxu0
    %v268 = vadd.f32 %v101, %v267
    %v269 = vpop.f32.mrb[0].mxu0
    %v270 = vadd.f32 %v105, %v269
    %271 = vmatprep.mubr.bf16.mxu0 0
    %272 = vmatmul.mubr.bf16.gmra.mrb[0].mxu0 %v128
    %v273 = vpop.f32.mrb[0].mxu0
    %v274 = vadd.f32 %v101, %v273
    %v275 = vpop.f32.mrb[0].mxu0
    %v276 = vadd.f32 %v105, %v275
    %v277 = vpop.f32.mrb[0].mxu0
    %v278 = vadd.f32 %v101, %v277
    %v279 = vpop.f32.mrb[0].mxu0
    %v280 = vadd.f32 %v105, %v279
    %281 = vmatprep.mubr.bf16.mxu0 0
    %282 = vmatmul.mubr.bf16.gmra.mrb[0].mxu0 %v131
    %v283 = vpop.f32.mrb[0].mxu0
    %v284 = vadd.f32 %v101, %v283
    %v285 = vpop.f32.mrb[0].mxu0
    %v286 = vadd.f32 %v105, %v285
    %v287 = vpop.f32.mrb[0].mxu0
    %v288 = vadd.f32 %v101, %v287
    %v289 = vpop.f32.mrb[0].mxu0
    %v290 = vadd.f32 %v105, %v289
    %291 = vdwg.mxu0
    %v292 = vpack.c.bf16 %v181, %v181
    %v293 = vpack.c.bf16 %v183, %v183
    %v294 = vpack.c.bf16 %v254, %v254
    %v295 = vpack.c.bf16 %v256, %v256
    %v296 = vpack.c.bf16 %v185, %v185
    %v297 = vpack.c.bf16 %v187, %v187
    %v298 = vpack.c.bf16 %v258, %v258
    %v299 = vpack.c.bf16 %v260, %v260
    %v300 = vpack.c.bf16 %v191, %v191
    %v301 = vpack.c.bf16 %v193, %v193
    %v302 = vpack.c.bf16 %v264, %v264
    %v303 = vpack.c.bf16 %v266, %v266
    %v304 = vpack.c.bf16 %v195, %v195
    %v305 = vpack.c.bf16 %v197, %v197
    %v306 = vpack.c.bf16 %v268, %v268
    %v307 = vpack.c.bf16 %v270, %v270
    %v308 = vpack.c.bf16 %v201, %v201
    %v309 = vpack.c.bf16 %v203, %v203
    %v310 = vpack.c.bf16 %v274, %v274
    %v311 = vpack.c.bf16 %v276, %v276
    %v312 = vpack.c.bf16 %v205, %v205
    %v313 = vpack.c.bf16 %v207, %v207
    %v314 = vpack.c.bf16 %v278, %v278
    %v315 = vpack.c.bf16 %v280, %v280
    %v316 = vpack.c.bf16 %v211, %v211
    %v317 = vpack.c.bf16 %v213, %v213
    %v318 = vpack.c.bf16 %v284, %v284
    %v319 = vpack.c.bf16 %v286, %v286
    %v320 = vpack.c.bf16 %v215, %v215
    %v321 = vpack.c.bf16 %v217, %v217
    %v322 = vpack.c.bf16 %v288, %v288
    %v323 = vpack.c.bf16 %v290, %v290
    %v356 = vunpack.c.l.b16 %v292
    %v357 = vunpack.c.l.b16 %v293
    %v358 = vunpack.c.l.b16 %v294
    %v359 = vunpack.c.l.b16 %v295
    %v360 = vunpack.c.l.b16 %v296
    %v361 = vunpack.c.l.b16 %v297
    %v362 = vunpack.c.l.b16 %v298
    %v363 = vunpack.c.l.b16 %v299
    %v364 = vunpack.c.l.b16 %v300
    %v365 = vunpack.c.l.b16 %v301
    %v366 = vunpack.c.l.b16 %v302
    %v367 = vunpack.c.l.b16 %v303
    %v368 = vunpack.c.l.b16 %v304
    %v369 = vunpack.c.l.b16 %v305
    %v370 = vunpack.c.l.b16 %v306
    %v371 = vunpack.c.l.b16 %v307
    %v372 = vunpack.c.l.b16 %v308
    %v373 = vunpack.c.l.b16 %v309
    %v374 = vunpack.c.l.b16 %v310
    %v375 = vunpack.c.l.b16 %v311
    %v376 = vunpack.c.l.b16 %v312
    %v377 = vunpack.c.l.b16 %v313
    %v378 = vunpack.c.l.b16 %v314
    %v379 = vunpack.c.l.b16 %v315
    %v380 = vunpack.c.l.b16 %v316
    %v381 = vunpack.c.l.b16 %v317
    %v382 = vunpack.c.l.b16 %v318
    %v383 = vunpack.c.l.b16 %v319
    %v384 = vunpack.c.l.b16 %v320
    %v385 = vunpack.c.l.b16 %v321
    %v386 = vunpack.c.l.b16 %v322
    %v387 = vunpack.c.l.b16 %v323
    %v388 = vpack.c.b16 %v357, %v356
    %v389 = vpack.c.b16 %v359, %v358
    %v390 = vpack.c.b16 %v361, %v360
    %v391 = vpack.c.b16 %v363, %v362
    %v392 = vpack.c.b16 %v365, %v364
    %v393 = vpack.c.b16 %v367, %v366
    %v394 = vpack.c.b16 %v369, %v368
    %v395 = vpack.c.b16 %v371, %v370
    %v396 = vpack.c.b16 %v373, %v372
    %v397 = vpack.c.b16 %v375, %v374
    %v398 = vpack.c.b16 %v377, %v376
    %v399 = vpack.c.b16 %v379, %v378
    %v400 = vpack.c.b16 %v381, %v380
    %v401 = vpack.c.b16 %v383, %v382
    %v402 = vpack.c.b16 %v385, %v384
    %v403 = vpack.c.b16 %v387, %v386
    %420 = vst [vmem:[#allocation2] sm:$0xff] %v388
    %421 = vst [vmem:[#allocation2 + $0x8] sm:$0xff] %v389
    %422 = vst [vmem:[#allocation2 + $0x10] sm:$0xff] %v390
    %423 = vst [vmem:[#allocation2 + $0x18] sm:$0xff] %v391
    %424 = vst [vmem:[#allocation2 + $0x20] sm:$0xff] %v392
    %425 = vst [vmem:[#allocation2 + $0x28] sm:$0xff] %v393
    %426 = vst [vmem:[#allocation2 + $0x30] sm:$0xff] %v394
    %427 = vst [vmem:[#allocation2 + $0x38] sm:$0xff] %v395
    %428 = vst [vmem:[#allocation2 + $0x40] sm:$0xff] %v396
    %429 = vst [vmem:[#allocation2 + $0x48] sm:$0xff] %v397
    %430 = vst [vmem:[#allocation2 + $0x50] sm:$0xff] %v398
    %431 = vst [vmem:[#allocation2 + $0x58] sm:$0xff] %v399
    %432 = vst [vmem:[#allocation2 + $0x60] sm:$0xff] %v400
    %433 = vst [vmem:[#allocation2 + $0x68] sm:$0xff] %v401
    %434 = vst [vmem:[#allocation2 + $0x70] sm:$0xff] %v402
    %435 = vst [vmem:[#allocation2 + $0x78] sm:$0xff] %v403
    %v436 = vld [vmem:[%s4] sm:$0xff]
    %v437 = vld [vmem:[#allocation6] sm:$0xff]
    %v438 = vld [vmem:[#allocation6 + $0x8] sm:$0xff]
    %v439 = vld [vmem:[#allocation6 + $0x10] sm:$0xff]
    %v440 = vld [vmem:[#allocation6 + $0x18] sm:$0xff]
    %v441 = vld [vmem:[#allocation6 + $0x20] sm:$0xff]
    %v442 = vld [vmem:[#allocation6 + $0x28] sm:$0xff]
    %v443 = vld [vmem:[#allocation6 + $0x30] sm:$0xff]
    %v444 = vld [vmem:[#allocation6 + $0x38] sm:$0xff]
    %v445 = vld [vmem:[#allocation6 + $0x40] sm:$0xff]
    %v446 = vld [vmem:[#allocation6 + $0x48] sm:$0xff]
    %v447 = vld [vmem:[#allocation6 + $0x50] sm:$0xff]
    %v448 = vld [vmem:[#allocation6 + $0x58] sm:$0xff]
    %v449 = vld [vmem:[#allocation6 + $0x60] sm:$0xff]
    %v450 = vld [vmem:[#allocation6 + $0x68] sm:$0xff]
    %v451 = vld [vmem:[#allocation6 + $0x70] sm:$0xff]
    %v452 = vld [vmem:[#allocation6 + $0x78] sm:$0xff]
    %v453 = vld [vmem:[#allocation6 + $0x80] sm:$0xff]
    %v454 = vld [vmem:[#allocation6 + $0x88] sm:$0xff]
    %v455 = vld [vmem:[#allocation6 + $0x90] sm:$0xff]
    %v456 = vld [vmem:[#allocation6 + $0x98] sm:$0xff]
    %v457 = vld [vmem:[#allocation6 + $0xa0] sm:$0xff]
    %v458 = vld [vmem:[#allocation6 + $0xa8] sm:$0xff]
    %v459 = vld [vmem:[#allocation6 + $0xb0] sm:$0xff]
    %v460 = vld [vmem:[#allocation6 + $0xb8] sm:$0xff]
    %v461 = vld [vmem:[#allocation6 + $0xc0] sm:$0xff]
    %v462 = vld [vmem:[#allocation6 + $0xc8] sm:$0xff]
    %v463 = vld [vmem:[#allocation6 + $0xd0] sm:$0xff]
    %v464 = vld [vmem:[#allocation6 + $0xd8] sm:$0xff]
    %v465 = vld [vmem:[#allocation6 + $0xe0] sm:$0xff]
    %v466 = vld [vmem:[#allocation6 + $0xe8] sm:$0xff]
    %v467 = vld [vmem:[#allocation6 + $0xf0] sm:$0xff]
    %v468 = vld [vmem:[#allocation6 + $0xf8] sm:$0xff]
    %v469 = vld [vmem:[%s7] sm:$0xff]
    %v470 = vld [vmem:[%s8] sm:$0xff]
    %v471 = vld [vmem:[#allocation2] sm:$0xff]
    %v472 = vld [vmem:[#allocation2 + $0x8] sm:$0xff]
    %v473 = vunpack.c.l.bf16 %v471
    %v474 = vunpack.c.h.bf16 %v471
    %v475 = vunpack.c.l.bf16 %v472
    %v476 = vunpack.c.h.bf16 %v472
    %v477 = vpack.c.bf16 %v469, %v469
    %v510 = vunpack.c.l.b16 %v437
    %v511 = vunpack.c.h.b16 %v437
    %v512 = vunpack.c.l.b16 %v438
    %v513 = vunpack.c.h.b16 %v438
    %v514 = vunpack.c.l.b16 %v439
    %v515 = vunpack.c.h.b16 %v439
    %v516 = vunpack.c.l.b16 %v440
    %v517 = vunpack.c.h.b16 %v440
    %v518 = vunpack.c.l.b16 %v441
    %v519 = vunpack.c.h.b16 %v441
    %v520 = vunpack.c.l.b16 %v442
    %v521 = vunpack.c.h.b16 %v442
    %v522 = vunpack.c.l.b16 %v443
    %v523 = vunpack.c.h.b16 %v443
    %v524 = vunpack.c.l.b16 %v444
    %v525 = vunpack.c.h.b16 %v444
    %v526 = vunpack.c.l.b16 %v445
    %v527 = vunpack.c.h.b16 %v445
    %v528 = vunpack.c.l.b16 %v446
    %v529 = vunpack.c.h.b16 %v446
    %v530 = vunpack.c.l.b16 %v447
    %v531 = vunpack.c.h.b16 %v447
    %v532 = vunpack.c.l.b16 %v448
    %v533 = vunpack.c.h.b16 %v448
    %v534 = vunpack.c.l.b16 %v449
    %v535 = vunpack.c.h.b16 %v449
    %v536 = vunpack.c.l.b16 %v450
    %v537 = vunpack.c.h.b16 %v450
    %v538 = vunpack.c.l.b16 %v451
    %v539 = vunpack.c.h.b16 %v451
    %v540 = vunpack.c.l.b16 %v452
    %v541 = vunpack.c.h.b16 %v452
    %v542 = vunpack.c.l.b16 %v453
    %v543 = vunpack.c.h.b16 %v453
    %v544 = vunpack.c.l.b16 %v454
    %v545 = vunpack.c.h.b16 %v454
    %v546 = vunpack.c.l.b16 %v455
    %v547 = vunpack.c.h.b16 %v455
    %v548 = vunpack.c.l.b16 %v456
    %v549 = vunpack.c.h.b16 %v456
    %v550 = vunpack.c.l.b16 %v457
    %v551 = vunpack.c.h.b16 %v457
    %v552 = vunpack.c.l.b16 %v458
    %v553 = vunpack.c.h.b16 %v458
    %v554 = vunpack.c.l.b16 %v459
    %v555 = vunpack.c.h.b16 %v459
    %v556 = vunpack.c.l.b16 %v460
    %v557 = vunpack.c.h.b16 %v460
    %v558 = vunpack.c.l.b16 %v461
    %v559 = vunpack.c.h.b16 %v461
    %v560 = vunpack.c.l.b16 %v462
    %v561 = vunpack.c.h.b16 %v462
    %v562 = vunpack.c.l.b16 %v463
    %v563 = vunpack.c.h.b16 %v463
    %v564 = vunpack.c.l.b16 %v464
    %v565 = vunpack.c.h.b16 %v464
    %v566 = vunpack.c.l.b16 %v465
    %v567 = vunpack.c.h.b16 %v465
    %v568 = vunpack.c.l.b16 %v466
    %v569 = vunpack.c.h.b16 %v466
    %v570 = vunpack.c.l.b16 %v467
    %v571 = vunpack.c.h.b16 %v467
    %v572 = vunpack.c.l.b16 %v468
    %v573 = vunpack.c.h.b16 %v468
    %v574 = vpack.c.b16 %v514, %v510
    %v575 = vpack.c.b16 %v515, %v511
    %v576 = vpack.c.b16 %v516, %v512
    %v577 = vpack.c.b16 %v517, %v513
    %v578 = vpack.c.b16 %v522, %v518
    %v579 = vpack.c.b16 %v523, %v519
    %v580 = vpack.c.b16 %v524, %v520
    %v581 = vpack.c.b16 %v525, %v521
    %v582 = vpack.c.b16 %v530, %v526
    %v583 = vpack.c.b16 %v531, %v527
    %v584 = vpack.c.b16 %v532, %v528
    %v585 = vpack.c.b16 %v533, %v529
    %v586 = vpack.c.b16 %v538, %v534
    %v587 = vpack.c.b16 %v539, %v535
    %v588 = vpack.c.b16 %v540, %v536
    %v589 = vpack.c.b16 %v541, %v537
    %v590 = vpack.c.b16 %v546, %v542
    %v591 = vpack.c.b16 %v547, %v543
    %v592 = vpack.c.b16 %v548, %v544
    %v593 = vpack.c.b16 %v549, %v545
    %v594 = vpack.c.b16 %v554, %v550
    %v595 = vpack.c.b16 %v555, %v551
    %v596 = vpack.c.b16 %v556, %v552
    %v597 = vpack.c.b16 %v557, %v553
    %v598 = vpack.c.b16 %v562, %v558
    %v599 = vpack.c.b16 %v563, %v559
    %v600 = vpack.c.b16 %v564, %v560
    %v601 = vpack.c.b16 %v565, %v561
    %v602 = vpack.c.b16 %v570, %v566
    %v603 = vpack.c.b16 %v571, %v567
    %v604 = vpack.c.b16 %v572, %v568
    %v605 = vpack.c.b16 %v573, %v569
    %638 = vmatprep.subr.bf16.mxu0 %v575
    %639 = vmatpush1.bf16.msra.mxu0 %v574
    %640 = vmatprep.subr.bf16.mxu0 %v579
    %641 = vmatpush1.bf16.msra.mxu0 %v578
    %642 = vmatprep.subr.bf16.mxu0 %v583
    %643 = vmatpush1.bf16.msra.mxu0 %v582
    %644 = vmatprep.subr.bf16.mxu0 %v587
    %645 = vmatpush1.bf16.msra.mxu0 %v586
    %646 = vmatprep.subr.bf16.mxu0 %v591
    %647 = vmatpush1.bf16.msra.mxu0 %v590
    %648 = vmatprep.subr.bf16.mxu0 %v595
    %649 = vmatpush1.bf16.msra.mxu0 %v594
    %650 = vmatprep.subr.bf16.mxu0 %v599
    %651 = vmatpush1.bf16.msra.mxu0 %v598
    %652 = vmatprep.subr.bf16.mxu0 %v603
    %653 = vmatpush1.bf16.msra.mxu0 %v602
    %654 = vmatprep.subr.bf16.mxu0 0
    %655 = vmatpush1.bf16.msra.mxu0 0
    %656 = vmatprep.subr.bf16.mxu0 0
    %657 = vmatpush1.bf16.msra.mxu0 0
    %658 = vmatprep.subr.bf16.mxu0 0
    %659 = vmatpush1.bf16.msra.mxu0 0
    %660 = vmatprep.subr.bf16.mxu0 0
    %661 = vmatpush1.bf16.msra.mxu0 0
    %662 = vmatprep.subr.bf16.mxu0 0
    %663 = vmatpush1.bf16.msra.mxu0 0
    %664 = vmatprep.subr.bf16.mxu0 0
    %665 = vmatpush1.bf16.msra.mxu0 0
    %666 = vmatprep.subr.bf16.mxu0 0
    %667 = vmatpush1.bf16.msra.mxu0 0
    %668 = vmatprep.subr.bf16.mxu0 0
    %669 = vmatpush1.bf16.msra.mxu0 0
    %670 = vmatprep.mubr.bf16.mxu0 0
    %671 = vmatmul.mubr.bf16.gmra.mrb[0].mxu0 %v477
    %v672 = vpop.f32.mrb[0].mxu0
    %v673 = vadd.f32 0.0, %v672
    %v674 = vpop.f32.mrb[0].mxu0
    %v675 = vadd.f32 0.0, %v674
    %v676 = vpop.f32.mrb[0].mxu0
    %v677 = vpop.f32.mrb[0].mxu0
    %678 = vdwg.mxu0
    %679 = vmatprep.subr.bf16.mxu0 %v577
    %680 = vmatpush1.bf16.msra.mxu0 %v576
    %681 = vmatprep.subr.bf16.mxu0 %v581
    %682 = vmatpush1.bf16.msra.mxu0 %v580
    %683 = vmatprep.subr.bf16.mxu0 %v585
    %684 = vmatpush1.bf16.msra.mxu0 %v584
    %685 = vmatprep.subr.bf16.mxu0 %v589
    %686 = vmatpush1.bf16.msra.mxu0 %v588
    %687 = vmatprep.subr.bf16.mxu0 %v593
    %688 = vmatpush1.bf16.msra.mxu0 %v592
    %689 = vmatprep.subr.bf16.mxu0 %v597
    %690 = vmatpush1.bf16.msra.mxu0 %v596
    %691 = vmatprep.subr.bf16.mxu0 %v601
    %692 = vmatpush1.bf16.msra.mxu0 %v600
    %693 = vmatprep.subr.bf16.mxu0 %v605
    %694 = vmatpush1.bf16.msra.mxu0 %v604
    %695 = vmatprep.subr.bf16.mxu0 0
    %696 = vmatpush1.bf16.msra.mxu0 0
    %697 = vmatprep.subr.bf16.mxu0 0
    %698 = vmatpush1.bf16.msra.mxu0 0
    %699 = vmatprep.subr.bf16.mxu0 0
    %700 = vmatpush1.bf16.msra.mxu0 0
    %701 = vmatprep.subr.bf16.mxu0 0
    %702 = vmatpush1.bf16.msra.mxu0 0
    %703 = vmatprep.subr.bf16.mxu0 0
    %704 = vmatpush1.bf16.msra.mxu0 0
    %705 = vmatprep.subr.bf16.mxu0 0
    %706 = vmatpush1.bf16.msra.mxu0 0
    %707 = vmatprep.subr.bf16.mxu0 0
    %708 = vmatpush1.bf16.msra.mxu0 0
    %709 = vmatprep.subr.bf16.mxu0 0
    %710 = vmatpush1.bf16.msra.mxu0 0
    %711 = vmatprep.mubr.bf16.mxu0 0
    %712 = vmatmul.mubr.bf16.gmra.mrb[0].mxu0 %v477
    %v713 = vpop.f32.mrb[0].mxu0
    %v714 = vadd.f32 0.0, %v713
    %v715 = vpop.f32.mrb[0].mxu0
    %v716 = vadd.f32 0.0, %v715
    %v717 = vpop.f32.mrb[0].mxu0
    %v718 = vpop.f32.mrb[0].mxu0
    %719 = vdwg.mxu0
    %v720 = vadd.f32 %v473, %v673
    %v721 = vadd.f32 %v474, %v675
    %v722 = vadd.f32 %v475, %v714
    %v723 = vadd.f32 %v476, %v716
    %v724 = vmul.f32 %v720, 0.5
    %v725 = vtanh.pop %v724
    %v726 = vmul.f32 %v725, 0.5
    %v727 = vadd.f32 %v726, 0.5
    %v728 = vmul.f32 %v721, 0.5
    %v729 = vtanh.pop %v728
    %v730 = vmul.f32 %v729, 0.5
    %v731 = vadd.f32 %v730, 0.5
    %v732 = vtanh.pop %v722
    %v733 = vmul.f32 %v723, 0.5
    %v734 = vtanh.pop %v733
    %v735 = vmul.f32 %v734, 0.5
    %v736 = vadd.f32 %v735, 0.5
    %v737 = vmul.f32 %v731, %v470
    %v738 = vmul.f32 %v727, %v732
    %v739 = vadd.f32 %v737, %v738
    %v740 = vtanh.pop %v739
    %v741 = vmul.f32 %v736, %v740
    %vm742 = vcmp.eq.s32.totalorder %v436, 0
    %v743 = vsel %vm742, 1, 0
    %744 = vset.pattern.permute.xlu0 0
    %745 = vperm.xlu0 %744, %v743
    %v746 = vpop.permute.xlu0 %745
    %vm747 = vcmp.eq.s32.totalorder %v746, 1
    %v748 = vsel %vm747, %v741, 0.0
    %s749 = scalar_lea.vmem [#allocation2], 16
    %v750 = vld [vmem:[%s749] sm:$0xff]
    %v751 = vld [vmem:[%s749 + $0x8] sm:$0xff]
    %v752 = vunpack.c.l.bf16 %v750
    %v753 = vunpack.c.h.bf16 %v750
    %v754 = vunpack.c.l.bf16 %v751
    %v755 = vunpack.c.h.bf16 %v751
    %v756 = vpack.c.bf16 %v741, %v741
    %757 = vmatprep.subr.bf16.mxu0 %v575
    %758 = vmatpush1.bf16.msra.mxu0 %v574
    %759 = vmatprep.subr.bf16.mxu0 %v579
    %760 = vmatpush1.bf16.msra.mxu0 %v578
    %761 = vmatprep.subr.bf16.mxu0 %v583
    %762 = vmatpush1.bf16.msra.mxu0 %v582
    %763 = vmatprep.subr.bf16.mxu0 %v587
    %764 = vmatpush1.bf16.msra.mxu0 %v586
    %765 = vmatprep.subr.bf16.mxu0 %v591
    %766 = vmatpush1.bf16.msra.mxu0 %v590
    %767 = vmatprep.subr.bf16.mxu0 %v595
    %768 = vmatpush1.bf16.msra.mxu0 %v594
    %769 = vmatprep.subr.bf16.mxu0 %v599
    %770 = vmatpush1.bf16.msra.mxu0 %v598
    %771 = vmatprep.subr.bf16.mxu0 %v603
    %772 = vmatpush1.bf16.msra.mxu0 %v602
    %773 = vmatprep.subr.bf16.mxu0 0
    %774 = vmatpush1.bf16.msra.mxu0 0
    %775 = vmatprep.subr.bf16.mxu0 0
    %776 = vmatpush1.bf16.msra.mxu0 0
    %777 = vmatprep.subr.bf16.mxu0 0
    %778 = vmatpush1.bf16.msra.mxu0 0
    %779 = vmatprep.subr.bf16.mxu0 0
    %780 = vmatpush1.bf16.msra.mxu0 0
    %781 = vmatprep.subr.bf16.mxu0 0
    %782 = vmatpush1.bf16.msra.mxu0 0
    %783 = vmatprep.subr.bf16.mxu0 0
    %784 = vmatpush1.bf16.msra.mxu0 0
    %785 = vmatprep.subr.bf16.mxu0 0
    %786 = vmatpush1.bf16.msra.mxu0 0
    %787 = vmatprep.subr.bf16.mxu0 0
    %788 = vmatpush1.bf16.msra.mxu0 0
    %789 = vmatprep.mubr.bf16.mxu0 0
    %790 = vmatmul.mubr.bf16.gmra.mrb[0].mxu0 %v756
    %v791 = vpop.f32.mrb[0].mxu0
    %v792 = vadd.f32 0.0, %v791
    %v793 = vpop.f32.mrb[0].mxu0
    %v794 = vadd.f32 0.0, %v793
    %v795 = vpop.f32.mrb[0].mxu0
    %v796 = vpop.f32.mrb[0].mxu0
    %797 = vdwg.mxu0
    %798 = vmatprep.subr.bf16.mxu0 %v577
    %799 = vmatpush1.bf16.msra.mxu0 %v576
    %800 = vmatprep.subr.bf16.mxu0 %v581
    %801 = vmatpush1.bf16.msra.mxu0 %v580
    %802 = vmatprep.subr.bf16.mxu0 %v585
    %803 = vmatpush1.bf16.msra.mxu0 %v584
    %804 = vmatprep.subr.bf16.mxu0 %v589
    %805 = vmatpush1.bf16.msra.mxu0 %v588
    %806 = vmatprep.subr.bf16.mxu0 %v593
    %807 = vmatpush1.bf16.msra.mxu0 %v592
    %808 = vmatprep.subr.bf16.mxu0 %v597
    %809 = vmatpush1.bf16.msra.mxu0 %v596
    %810 = vmatprep.subr.bf16.mxu0 %v601
    %811 = vmatpush1.bf16.msra.mxu0 %v600
    %812 = vmatprep.subr.bf16.mxu0 %v605
    %813 = vmatpush1.bf16.msra.mxu0 %v604
    %814 = vmatprep.subr.bf16.mxu0 0
    %815 = vmatpush1.bf16.msra.mxu0 0
    %816 = vmatprep.subr.bf16.mxu0 0
    %817 = vmatpush1.bf16.msra.mxu0 0
    %818 = vmatprep.subr.bf16.mxu0 0
    %819 = vmatpush1.bf16.msra.mxu0 0
    %820 = vmatprep.subr.bf16.mxu0 0
    %821 = vmatpush1.bf16.msra.mxu0 0
    %822 = vmatprep.subr.bf16.mxu0 0
    %823 = vmatpush1.bf16.msra.mxu0 0
    %824 = vmatprep.subr.bf16.mxu0 0
    %825 = vmatpush1.bf16.msra.mxu0 0
    %826 = vmatprep.subr.bf16.mxu0 0
    %827 = vmatpush1.bf16.msra.mxu0 0
    %828 = vmatprep.subr.bf16.mxu0 0
    %829 = vmatpush1.bf16.msra.mxu0 0
    %830 = vmatprep.mubr.bf16.mxu0 0
    %831 = vmatmul.mubr.bf16.gmra.mrb[0].mxu0 %v756
    %v832 = vpop.f32.mrb[0].mxu0
    %v833 = vadd.f32 0.0, %v832
    %v834 = vpop.f32.mrb[0].mxu0
    %v835 = vadd.f32 0.0, %v834
    %v836 = vpop.f32.mrb[0].mxu0
    %v837 = vpop.f32.mrb[0].mxu0
    %838 = vdwg.mxu0
    %v839 = vadd.f32 %v752, %v792
    %v840 = vadd.f32 %v753, %v794
    %v841 = vadd.f32 %v754, %v833
    %v842 = vadd.f32 %v755, %v835
    %v843 = vmul.f32 %v839, 0.5
    %v844 = vtanh.pop %v843
    %v845 = vmul.f32 %v844, 0.5
    %v846 = vadd.f32 %v845, 0.5
    %v847 = vmul.f32 %v840, 0.5
    %v848 = vtanh.pop %v847
    %v849 = vmul.f32 %v848, 0.5
    %v850 = vadd.f32 %v849, 0.5
    %v851 = vtanh.pop %v841
    %v852 = vmul.f32 %v842, 0.5
    %v853 = vtanh.pop %v852
    %v854 = vmul.f32 %v853, 0.5
    %v855 = vadd.f32 %v854, 0.5
    %v856 = vmul.f32 %v850, %v739
    %v857 = vmul.f32 %v846, %v851
    %v858 = vadd.f32 %v856, %v857
    %v859 = vtanh.pop %v858
    %v860 = vmul.f32 %v855, %v859
    %vm861 = vcmp.eq.s32.totalorder %v436, 1
    %v862 = vsel %vm861, 1, 0
    %863 = vset.pattern.permute.xlu0 0
    %864 = vperm.xlu0 %863, %v862
    %v865 = vpop.permute.xlu0 %864
    %vm866 = vcmp.eq.s32.totalorder %v865, 1
    %v867 = vsel %vm866, %v860, %v748
    %s868 = scalar_lea.vmem [#allocation2], 32
    %v869 = vld [vmem:[%s868] sm:$0xff]
    %v870 = vld [vmem:[%s868 + $0x8] sm:$0xff]
    %v871 = vunpack.c.l.bf16 %v869
    %v872 = vunpack.c.h.bf16 %v869
    %v873 = vunpack.c.l.bf16 %v870
    %v874 = vunpack.c.h.bf16 %v870
    %v875 = vpack.c.bf16 %v860, %v860
    %876 = vmatprep.subr.bf16.mxu0 %v575
    %877 = vmatpush1.bf16.msra.mxu0 %v574
    %878 = vmatprep.subr.bf16.mxu0 %v579
    %879 = vmatpush1.bf16.msra.mxu0 %v578
    %880 = vmatprep.subr.bf16.mxu0 %v583
    %881 = vmatpush1.bf16.msra.mxu0 %v582
    %882 = vmatprep.subr.bf16.mxu0 %v587
    %883 = vmatpush1.bf16.msra.mxu0 %v586
    %884 = vmatprep.subr.bf16.mxu0 %v591
    %885 = vmatpush1.bf16.msra.mxu0 %v590
    %886 = vmatprep.subr.bf16.mxu0 %v595
    %887 = vmatpush1.bf16.msra.mxu0 %v594
    %888 = vmatprep.subr.bf16.mxu0 %v599
    %889 = vmatpush1.bf16.msra.mxu0 %v598
    %890 = vmatprep.subr.bf16.mxu0 %v603
    %891 = vmatpush1.bf16.msra.mxu0 %v602
    %892 = vmatprep.subr.bf16.mxu0 0
    %893 = vmatpush1.bf16.msra.mxu0 0
    %894 = vmatprep.subr.bf16.mxu0 0
    %895 = vmatpush1.bf16.msra.mxu0 0
    %896 = vmatprep.subr.bf16.mxu0 0
    %897 = vmatpush1.bf16.msra.mxu0 0
    %898 = vmatprep.subr.bf16.mxu0 0
    %899 = vmatpush1.bf16.msra.mxu0 0
    %900 = vmatprep.subr.bf16.mxu0 0
    %901 = vmatpush1.bf16.msra.mxu0 0
    %902 = vmatprep.subr.bf16.mxu0 0
    %903 = vmatpush1.bf16.msra.mxu0 0
    %904 = vmatprep.subr.bf16.mxu0 0
    %905 = vmatpush1.bf16.msra.mxu0 0
    %906 = vmatprep.subr.bf16.mxu0 0
    %907 = vmatpush1.bf16.msra.mxu0 0
    %908 = vmatprep.mubr.bf16.mxu0 0
    %909 = vmatmul.mubr.bf16.gmra.mrb[0].mxu0 %v875
    %v910 = vpop.f32.mrb[0].mxu0
    %v911 = vadd.f32 0.0, %v910
    %v912 = vpop.f32.mrb[0].mxu0
    %v913 = vadd.f32 0.0, %v912
    %v914 = vpop.f32.mrb[0].mxu0
    %v915 = vpop.f32.mrb[0].mxu0
    %916 = vdwg.mxu0
    %917 = vmatprep.subr.bf16.mxu0 %v577
    %918 = vmatpush1.bf16.msra.mxu0 %v576
    %919 = vmatprep.subr.bf16.mxu0 %v581
    %920 = vmatpush1.bf16.msra.mxu0 %v580
    %921 = vmatprep.subr.bf16.mxu0 %v585
    %922 = vmatpush1.bf16.msra.mxu0 %v584
    %923 = vmatprep.subr.bf16.mxu0 %v589
    %924 = vmatpush1.bf16.msra.mxu0 %v588
    %925 = vmatprep.subr.bf16.mxu0 %v593
    %926 = vmatpush1.bf16.msra.mxu0 %v592
    %927 = vmatprep.subr.bf16.mxu0 %v597
    %928 = vmatpush1.bf16.msra.mxu0 %v596
    %929 = vmatprep.subr.bf16.mxu0 %v601
    %930 = vmatpush1.bf16.msra.mxu0 %v600
    %931 = vmatprep.subr.bf16.mxu0 %v605
    %932 = vmatpush1.bf16.msra.mxu0 %v604
    %933 = vmatprep.subr.bf16.mxu0 0
    %934 = vmatpush1.bf16.msra.mxu0 0
    %935 = vmatprep.subr.bf16.mxu0 0
    %936 = vmatpush1.bf16.msra.mxu0 0
    %937 = vmatprep.subr.bf16.mxu0 0
    %938 = vmatpush1.bf16.msra.mxu0 0
    %939 = vmatprep.subr.bf16.mxu0 0
    %940 = vmatpush1.bf16.msra.mxu0 0
    %941 = vmatprep.subr.bf16.mxu0 0
    %942 = vmatpush1.bf16.msra.mxu0 0
    %943 = vmatprep.subr.bf16.mxu0 0
    %944 = vmatpush1.bf16.msra.mxu0 0
    %945 = vmatprep.subr.bf16.mxu0 0
    %946 = vmatpush1.bf16.msra.mxu0 0
    %947 = vmatprep.subr.bf16.mxu0 0
    %948 = vmatpush1.bf16.msra.mxu0 0
    %949 = vmatprep.mubr.bf16.mxu0 0
    %950 = vmatmul.mubr.bf16.gmra.mrb[0].mxu0 %v875
    %v951 = vpop.f32.mrb[0].mxu0
    %v952 = vadd.f32 0.0, %v951
    %v953 = vpop.f32.mrb[0].mxu0
    %v954 = vadd.f32 0.0, %v953
    %v955 = vpop.f32.mrb[0].mxu0
    %v956 = vpop.f32.mrb[0].mxu0
    %957 = vdwg.mxu0
    %v958 = vadd.f32 %v871, %v911
    %v959 = vadd.f32 %v872, %v913
    %v960 = vadd.f32 %v873, %v952
    %v961 = vadd.f32 %v874, %v954
    %v962 = vmul.f32 %v958, 0.5
    %v963 = vtanh.pop %v962
    %v964 = vmul.f32 %v963, 0.5
    %v965 = vadd.f32 %v964, 0.5
    %v966 = vmul.f32 %v959, 0.5
    %v967 = vtanh.pop %v966
    %v968 = vmul.f32 %v967, 0.5
    %v969 = vadd.f32 %v968, 0.5
    %v970 = vtanh.pop %v960
    %v971 = vmul.f32 %v961, 0.5
    %v972 = vtanh.pop %v971
    %v973 = vmul.f32 %v972, 0.5
    %v974 = vadd.f32 %v973, 0.5
    %v975 = vmul.f32 %v969, %v858
    %v976 = vmul.f32 %v965, %v970
    %v977 = vadd.f32 %v975, %v976
    %v978 = vtanh.pop %v977
    %v979 = vmul.f32 %v974, %v978
    %vm980 = vcmp.eq.s32.totalorder %v436, 2
    %v981 = vsel %vm980, 1, 0
    %982 = vset.pattern.permute.xlu0 0
    %983 = vperm.xlu0 %982, %v981
    %v984 = vpop.permute.xlu0 %983
    %vm985 = vcmp.eq.s32.totalorder %v984, 1
    %v986 = vsel %vm985, %v979, %v867
    %s987 = scalar_lea.vmem [#allocation2], 48
    %v988 = vld [vmem:[%s987] sm:$0xff]
    %v989 = vld [vmem:[%s987 + $0x8] sm:$0xff]
    %v990 = vunpack.c.l.bf16 %v988
    %v991 = vunpack.c.h.bf16 %v988
    %v992 = vunpack.c.l.bf16 %v989
    %v993 = vunpack.c.h.bf16 %v989
    %v994 = vpack.c.bf16 %v979, %v979
    %995 = vmatprep.subr.bf16.mxu0 %v575
    %996 = vmatpush1.bf16.msra.mxu0 %v574
    %997 = vmatprep.subr.bf16.mxu0 %v579
    %998 = vmatpush1.bf16.msra.mxu0 %v578
    %999 = vmatprep.subr.bf16.mxu0 %v583
    %1000 = vmatpush1.bf16.msra.mxu0 %v582
    %1001 = vmatprep.subr.bf16.mxu0 %v587
    %1002 = vmatpush1.bf16.msra.mxu0 %v586
    %1003 = vmatprep.subr.bf16.mxu0 %v591
    %1004 = vmatpush1.bf16.msra.mxu0 %v590
    %1005 = vmatprep.subr.bf16.mxu0 %v595
    %1006 = vmatpush1.bf16.msra.mxu0 %v594
    %1007 = vmatprep.subr.bf16.mxu0 %v599
    %1008 = vmatpush1.bf16.msra.mxu0 %v598
    %1009 = vmatprep.subr.bf16.mxu0 %v603
    %1010 = vmatpush1.bf16.msra.mxu0 %v602
    %1011 = vmatprep.subr.bf16.mxu0 0
    %1012 = vmatpush1.bf16.msra.mxu0 0
    %1013 = vmatprep.subr.bf16.mxu0 0
    %1014 = vmatpush1.bf16.msra.mxu0 0
    %1015 = vmatprep.subr.bf16.mxu0 0
    %1016 = vmatpush1.bf16.msra.mxu0 0
    %1017 = vmatprep.subr.bf16.mxu0 0
    %1018 = vmatpush1.bf16.msra.mxu0 0
    %1019 = vmatprep.subr.bf16.mxu0 0
    %1020 = vmatpush1.bf16.msra.mxu0 0
    %1021 = vmatprep.subr.bf16.mxu0 0
    %1022 = vmatpush1.bf16.msra.mxu0 0
    %1023 = vmatprep.subr.bf16.mxu0 0
    %1024 = vmatpush1.bf16.msra.mxu0 0
    %1025 = vmatprep.subr.bf16.mxu0 0
    %1026 = vmatpush1.bf16.msra.mxu0 0
    %1027 = vmatprep.mubr.bf16.mxu0 0
    %1028 = vmatmul.mubr.bf16.gmra.mrb[0].mxu0 %v994
    %v1029 = vpop.f32.mrb[0].mxu0
    %v1030 = vadd.f32 0.0, %v1029
    %v1031 = vpop.f32.mrb[0].mxu0
    %v1032 = vadd.f32 0.0, %v1031
    %v1033 = vpop.f32.mrb[0].mxu0
    %v1034 = vpop.f32.mrb[0].mxu0
    %1035 = vdwg.mxu0
    %1036 = vmatprep.subr.bf16.mxu0 %v577
    %1037 = vmatpush1.bf16.msra.mxu0 %v576
    %1038 = vmatprep.subr.bf16.mxu0 %v581
    %1039 = vmatpush1.bf16.msra.mxu0 %v580
    %1040 = vmatprep.subr.bf16.mxu0 %v585
    %1041 = vmatpush1.bf16.msra.mxu0 %v584
    %1042 = vmatprep.subr.bf16.mxu0 %v589
    %1043 = vmatpush1.bf16.msra.mxu0 %v588
    %1044 = vmatprep.subr.bf16.mxu0 %v593
    %1045 = vmatpush1.bf16.msra.mxu0 %v592
    %1046 = vmatprep.subr.bf16.mxu0 %v597
    %1047 = vmatpush1.bf16.msra.mxu0 %v596
    %1048 = vmatprep.subr.bf16.mxu0 %v601
    %1049 = vmatpush1.bf16.msra.mxu0 %v600
    %1050 = vmatprep.subr.bf16.mxu0 %v605
    %1051 = vmatpush1.bf16.msra.mxu0 %v604
    %1052 = vmatprep.subr.bf16.mxu0 0
    %1053 = vmatpush1.bf16.msra.mxu0 0
    %1054 = vmatprep.subr.bf16.mxu0 0
    %1055 = vmatpush1.bf16.msra.mxu0 0
    %1056 = vmatprep.subr.bf16.mxu0 0
    %1057 = vmatpush1.bf16.msra.mxu0 0
    %1058 = vmatprep.subr.bf16.mxu0 0
    %1059 = vmatpush1.bf16.msra.mxu0 0
    %1060 = vmatprep.subr.bf16.mxu0 0
    %1061 = vmatpush1.bf16.msra.mxu0 0
    %1062 = vmatprep.subr.bf16.mxu0 0
    %1063 = vmatpush1.bf16.msra.mxu0 0
    %1064 = vmatprep.subr.bf16.mxu0 0
    %1065 = vmatpush1.bf16.msra.mxu0 0
    %1066 = vmatprep.subr.bf16.mxu0 0
    %1067 = vmatpush1.bf16.msra.mxu0 0
    %1068 = vmatprep.mubr.bf16.mxu0 0
    %1069 = vmatmul.mubr.bf16.gmra.mrb[0].mxu0 %v994
    %v1070 = vpop.f32.mrb[0].mxu0
    %v1071 = vadd.f32 0.0, %v1070
    %v1072 = vpop.f32.mrb[0].mxu0
    %v1073 = vadd.f32 0.0, %v1072
    %v1074 = vpop.f32.mrb[0].mxu0
    %v1075 = vpop.f32.mrb[0].mxu0
    %1076 = vdwg.mxu0
    %v1077 = vadd.f32 %v990, %v1030
    %v1078 = vadd.f32 %v991, %v1032
    %v1079 = vadd.f32 %v992, %v1071
    %v1080 = vadd.f32 %v993, %v1073
    %v1081 = vmul.f32 %v1077, 0.5
    %v1082 = vtanh.pop %v1081
    %v1083 = vmul.f32 %v1082, 0.5
    %v1084 = vadd.f32 %v1083, 0.5
    %v1085 = vmul.f32 %v1078, 0.5
    %v1086 = vtanh.pop %v1085
    %v1087 = vmul.f32 %v1086, 0.5
    %v1088 = vadd.f32 %v1087, 0.5
    %v1089 = vtanh.pop %v1079
    %v1090 = vmul.f32 %v1080, 0.5
    %v1091 = vtanh.pop %v1090
    %v1092 = vmul.f32 %v1091, 0.5
    %v1093 = vadd.f32 %v1092, 0.5
    %v1094 = vmul.f32 %v1088, %v977
    %v1095 = vmul.f32 %v1084, %v1089
    %v1096 = vadd.f32 %v1094, %v1095
    %v1097 = vtanh.pop %v1096
    %v1098 = vmul.f32 %v1093, %v1097
    %vm1099 = vcmp.eq.s32.totalorder %v436, 3
    %v1100 = vsel %vm1099, 1, 0
    %1101 = vset.pattern.permute.xlu0 0
    %1102 = vperm.xlu0 %1101, %v1100
    %v1103 = vpop.permute.xlu0 %1102
    %vm1104 = vcmp.eq.s32.totalorder %v1103, 1
    %v1105 = vsel %vm1104, %v1098, %v986
    %s1106 = scalar_lea.vmem [#allocation2], 64
    %v1107 = vld [vmem:[%s1106] sm:$0xff]
    %v1108 = vld [vmem:[%s1106 + $0x8] sm:$0xff]
    %v1109 = vunpack.c.l.bf16 %v1107
    %v1110 = vunpack.c.h.bf16 %v1107
    %v1111 = vunpack.c.l.bf16 %v1108
    %v1112 = vunpack.c.h.bf16 %v1108
    %v1113 = vpack.c.bf16 %v1098, %v1098
    %1114 = vmatprep.subr.bf16.mxu0 %v575
    %1115 = vmatpush1.bf16.msra.mxu0 %v574
    %1116 = vmatprep.subr.bf16.mxu0 %v579
    %1117 = vmatpush1.bf16.msra.mxu0 %v578
    %1118 = vmatprep.subr.bf16.mxu0 %v583
    %1119 = vmatpush1.bf16.msra.mxu0 %v582
    %1120 = vmatprep.subr.bf16.mxu0 %v587
    %1121 = vmatpush1.bf16.msra.mxu0 %v586
    %1122 = vmatprep.subr.bf16.mxu0 %v591
    %1123 = vmatpush1.bf16.msra.mxu0 %v590
    %1124 = vmatprep.subr.bf16.mxu0 %v595
    %1125 = vmatpush1.bf16.msra.mxu0 %v594
    %1126 = vmatprep.subr.bf16.mxu0 %v599
    %1127 = vmatpush1.bf16.msra.mxu0 %v598
    %1128 = vmatprep.subr.bf16.mxu0 %v603
    %1129 = vmatpush1.bf16.msra.mxu0 %v602
    %1130 = vmatprep.subr.bf16.mxu0 0
    %1131 = vmatpush1.bf16.msra.mxu0 0
    %1132 = vmatprep.subr.bf16.mxu0 0
    %1133 = vmatpush1.bf16.msra.mxu0 0
    %1134 = vmatprep.subr.bf16.mxu0 0
    %1135 = vmatpush1.bf16.msra.mxu0 0
    %1136 = vmatprep.subr.bf16.mxu0 0
    %1137 = vmatpush1.bf16.msra.mxu0 0
    %1138 = vmatprep.subr.bf16.mxu0 0
    %1139 = vmatpush1.bf16.msra.mxu0 0
    %1140 = vmatprep.subr.bf16.mxu0 0
    %1141 = vmatpush1.bf16.msra.mxu0 0
    %1142 = vmatprep.subr.bf16.mxu0 0
    %1143 = vmatpush1.bf16.msra.mxu0 0
    %1144 = vmatprep.subr.bf16.mxu0 0
    %1145 = vmatpush1.bf16.msra.mxu0 0
    %1146 = vmatprep.mubr.bf16.mxu0 0
    %1147 = vmatmul.mubr.bf16.gmra.mrb[0].mxu0 %v1113
    %v1148 = vpop.f32.mrb[0].mxu0
    %v1149 = vadd.f32 0.0, %v1148
    %v1150 = vpop.f32.mrb[0].mxu0
    %v1151 = vadd.f32 0.0, %v1150
    %v1152 = vpop.f32.mrb[0].mxu0
    %v1153 = vpop.f32.mrb[0].mxu0
    %1154 = vdwg.mxu0
    %1155 = vmatprep.subr.bf16.mxu0 %v577
    %1156 = vmatpush1.bf16.msra.mxu0 %v576
    %1157 = vmatprep.subr.bf16.mxu0 %v581
    %1158 = vmatpush1.bf16.msra.mxu0 %v580
    %1159 = vmatprep.subr.bf16.mxu0 %v585
    %1160 = vmatpush1.bf16.msra.mxu0 %v584
    %1161 = vmatprep.subr.bf16.mxu0 %v589
    %1162 = vmatpush1.bf16.msra.mxu0 %v588
    %1163 = vmatprep.subr.bf16.mxu0 %v593
    %1164 = vmatpush1.bf16.msra.mxu0 %v592
    %1165 = vmatprep.subr.bf16.mxu0 %v597
    %1166 = vmatpush1.bf16.msra.mxu0 %v596
    %1167 = vmatprep.subr.bf16.mxu0 %v601
    %1168 = vmatpush1.bf16.msra.mxu0 %v600
    %1169 = vmatprep.subr.bf16.mxu0 %v605
    %1170 = vmatpush1.bf16.msra.mxu0 %v604
    %1171 = vmatprep.subr.bf16.mxu0 0
    %1172 = vmatpush1.bf16.msra.mxu0 0
    %1173 = vmatprep.subr.bf16.mxu0 0
    %1174 = vmatpush1.bf16.msra.mxu0 0
    %1175 = vmatprep.subr.bf16.mxu0 0
    %1176 = vmatpush1.bf16.msra.mxu0 0
    %1177 = vmatprep.subr.bf16.mxu0 0
    %1178 = vmatpush1.bf16.msra.mxu0 0
    %1179 = vmatprep.subr.bf16.mxu0 0
    %1180 = vmatpush1.bf16.msra.mxu0 0
    %1181 = vmatprep.subr.bf16.mxu0 0
    %1182 = vmatpush1.bf16.msra.mxu0 0
    %1183 = vmatprep.subr.bf16.mxu0 0
    %1184 = vmatpush1.bf16.msra.mxu0 0
    %1185 = vmatprep.subr.bf16.mxu0 0
    %1186 = vmatpush1.bf16.msra.mxu0 0
    %1187 = vmatprep.mubr.bf16.mxu0 0
    %1188 = vmatmul.mubr.bf16.gmra.mrb[0].mxu0 %v1113
    %v1189 = vpop.f32.mrb[0].mxu0
    %v1190 = vadd.f32 0.0, %v1189
    %v1191 = vpop.f32.mrb[0].mxu0
    %v1192 = vadd.f32 0.0, %v1191
    %v1193 = vpop.f32.mrb[0].mxu0
    %v1194 = vpop.f32.mrb[0].mxu0
    %1195 = vdwg.mxu0
    %v1196 = vadd.f32 %v1109, %v1149
    %v1197 = vadd.f32 %v1110, %v1151
    %v1198 = vadd.f32 %v1111, %v1190
    %v1199 = vadd.f32 %v1112, %v1192
    %v1200 = vmul.f32 %v1196, 0.5
    %v1201 = vtanh.pop %v1200
    %v1202 = vmul.f32 %v1201, 0.5
    %v1203 = vadd.f32 %v1202, 0.5
    %v1204 = vmul.f32 %v1197, 0.5
    %v1205 = vtanh.pop %v1204
    %v1206 = vmul.f32 %v1205, 0.5
    %v1207 = vadd.f32 %v1206, 0.5
    %v1208 = vtanh.pop %v1198
    %v1209 = vmul.f32 %v1199, 0.5
    %v1210 = vtanh.pop %v1209
    %v1211 = vmul.f32 %v1210, 0.5
    %v1212 = vadd.f32 %v1211, 0.5
    %v1213 = vmul.f32 %v1207, %v1096
    %v1214 = vmul.f32 %v1203, %v1208
    %v1215 = vadd.f32 %v1213, %v1214
    %v1216 = vtanh.pop %v1215
    %v1217 = vmul.f32 %v1212, %v1216
    %vm1218 = vcmp.eq.s32.totalorder %v436, 4
    %v1219 = vsel %vm1218, 1, 0
    %1220 = vset.pattern.permute.xlu0 0
    %1221 = vperm.xlu0 %1220, %v1219
    %v1222 = vpop.permute.xlu0 %1221
    %vm1223 = vcmp.eq.s32.totalorder %v1222, 1
    %v1224 = vsel %vm1223, %v1217, %v1105
    %s1225 = scalar_lea.vmem [#allocation2], 80
    %v1226 = vld [vmem:[%s1225] sm:$0xff]
    %v1227 = vld [vmem:[%s1225 + $0x8] sm:$0xff]
    %v1228 = vunpack.c.l.bf16 %v1226
    %v1229 = vunpack.c.h.bf16 %v1226
    %v1230 = vunpack.c.l.bf16 %v1227
    %v1231 = vunpack.c.h.bf16 %v1227
    %v1232 = vpack.c.bf16 %v1217, %v1217
    %1233 = vmatprep.subr.bf16.mxu0 %v575
    %1234 = vmatpush1.bf16.msra.mxu0 %v574
    %1235 = vmatprep.subr.bf16.mxu0 %v579
    %1236 = vmatpush1.bf16.msra.mxu0 %v578
    %1237 = vmatprep.subr.bf16.mxu0 %v583
    %1238 = vmatpush1.bf16.msra.mxu0 %v582
    %1239 = vmatprep.subr.bf16.mxu0 %v587
    %1240 = vmatpush1.bf16.msra.mxu0 %v586
    %1241 = vmatprep.subr.bf16.mxu0 %v591
    %1242 = vmatpush1.bf16.msra.mxu0 %v590
    %1243 = vmatprep.subr.bf16.mxu0 %v595
    %1244 = vmatpush1.bf16.msra.mxu0 %v594
    %1245 = vmatprep.subr.bf16.mxu0 %v599
    %1246 = vmatpush1.bf16.msra.mxu0 %v598
    %1247 = vmatprep.subr.bf16.mxu0 %v603
    %1248 = vmatpush1.bf16.msra.mxu0 %v602
    %1249 = vmatprep.subr.bf16.mxu0 0
    %1250 = vmatpush1.bf16.msra.mxu0 0
    %1251 = vmatprep.subr.bf16.mxu0 0
    %1252 = vmatpush1.bf16.msra.mxu0 0
    %1253 = vmatprep.subr.bf16.mxu0 0
    %1254 = vmatpush1.bf16.msra.mxu0 0
    %1255 = vmatprep.subr.bf16.mxu0 0
    %1256 = vmatpush1.bf16.msra.mxu0 0
    %1257 = vmatprep.subr.bf16.mxu0 0
    %1258 = vmatpush1.bf16.msra.mxu0 0
    %1259 = vmatprep.subr.bf16.mxu0 0
    %1260 = vmatpush1.bf16.msra.mxu0 0
    %1261 = vmatprep.subr.bf16.mxu0 0
    %1262 = vmatpush1.bf16.msra.mxu0 0
    %1263 = vmatprep.subr.bf16.mxu0 0
    %1264 = vmatpush1.bf16.msra.mxu0 0
    %1265 = vmatprep.mubr.bf16.mxu0 0
    %1266 = vmatmul.mubr.bf16.gmra.mrb[0].mxu0 %v1232
    %v1267 = vpop.f32.mrb[0].mxu0
    %v1268 = vadd.f32 0.0, %v1267
    %v1269 = vpop.f32.mrb[0].mxu0
    %v1270 = vadd.f32 0.0, %v1269
    %v1271 = vpop.f32.mrb[0].mxu0
    %v1272 = vpop.f32.mrb[0].mxu0
    %1273 = vdwg.mxu0
    %1274 = vmatprep.subr.bf16.mxu0 %v577
    %1275 = vmatpush1.bf16.msra.mxu0 %v576
    %1276 = vmatprep.subr.bf16.mxu0 %v581
    %1277 = vmatpush1.bf16.msra.mxu0 %v580
    %1278 = vmatprep.subr.bf16.mxu0 %v585
    %1279 = vmatpush1.bf16.msra.mxu0 %v584
    %1280 = vmatprep.subr.bf16.mxu0 %v589
    %1281 = vmatpush1.bf16.msra.mxu0 %v588
    %1282 = vmatprep.subr.bf16.mxu0 %v593
    %1283 = vmatpush1.bf16.msra.mxu0 %v592
    %1284 = vmatprep.subr.bf16.mxu0 %v597
    %1285 = vmatpush1.bf16.msra.mxu0 %v596
    %1286 = vmatprep.subr.bf16.mxu0 %v601
    %1287 = vmatpush1.bf16.msra.mxu0 %v600
    %1288 = vmatprep.subr.bf16.mxu0 %v605
    %1289 = vmatpush1.bf16.msra.mxu0 %v604
    %1290 = vmatprep.subr.bf16.mxu0 0
    %1291 = vmatpush1.bf16.msra.mxu0 0
    %1292 = vmatprep.subr.bf16.mxu0 0
    %1293 = vmatpush1.bf16.msra.mxu0 0
    %1294 = vmatprep.subr.bf16.mxu0 0
    %1295 = vmatpush1.bf16.msra.mxu0 0
    %1296 = vmatprep.subr.bf16.mxu0 0
    %1297 = vmatpush1.bf16.msra.mxu0 0
    %1298 = vmatprep.subr.bf16.mxu0 0
    %1299 = vmatpush1.bf16.msra.mxu0 0
    %1300 = vmatprep.subr.bf16.mxu0 0
    %1301 = vmatpush1.bf16.msra.mxu0 0
    %1302 = vmatprep.subr.bf16.mxu0 0
    %1303 = vmatpush1.bf16.msra.mxu0 0
    %1304 = vmatprep.subr.bf16.mxu0 0
    %1305 = vmatpush1.bf16.msra.mxu0 0
    %1306 = vmatprep.mubr.bf16.mxu0 0
    %1307 = vmatmul.mubr.bf16.gmra.mrb[0].mxu0 %v1232
    %v1308 = vpop.f32.mrb[0].mxu0
    %v1309 = vadd.f32 0.0, %v1308
    %v1310 = vpop.f32.mrb[0].mxu0
    %v1311 = vadd.f32 0.0, %v1310
    %v1312 = vpop.f32.mrb[0].mxu0
    %v1313 = vpop.f32.mrb[0].mxu0
    %1314 = vdwg.mxu0
    %v1315 = vadd.f32 %v1228, %v1268
    %v1316 = vadd.f32 %v1229, %v1270
    %v1317 = vadd.f32 %v1230, %v1309
    %v1318 = vadd.f32 %v1231, %v1311
    %v1319 = vmul.f32 %v1315, 0.5
    %v1320 = vtanh.pop %v1319
    %v1321 = vmul.f32 %v1320, 0.5
    %v1322 = vadd.f32 %v1321, 0.5
    %v1323 = vmul.f32 %v1316, 0.5
    %v1324 = vtanh.pop %v1323
    %v1325 = vmul.f32 %v1324, 0.5
    %v1326 = vadd.f32 %v1325, 0.5
    %v1327 = vtanh.pop %v1317
    %v1328 = vmul.f32 %v1318, 0.5
    %v1329 = vtanh.pop %v1328
    %v1330 = vmul.f32 %v1329, 0.5
    %v1331 = vadd.f32 %v1330, 0.5
    %v1332 = vmul.f32 %v1326, %v1215
    %v1333 = vmul.f32 %v1322, %v1327
    %v1334 = vadd.f32 %v1332, %v1333
    %v1335 = vtanh.pop %v1334
    %v1336 = vmul.f32 %v1331, %v1335
    %vm1337 = vcmp.eq.s32.totalorder %v436, 5
    %v1338 = vsel %vm1337, 1, 0
    %1339 = vset.pattern.permute.xlu0 0
    %1340 = vperm.xlu0 %1339, %v1338
    %v1341 = vpop.permute.xlu0 %1340
    %vm1342 = vcmp.eq.s32.totalorder %v1341, 1
    %v1343 = vsel %vm1342, %v1336, %v1224
    %s1344 = scalar_lea.vmem [#allocation2], 96
    %v1345 = vld [vmem:[%s1344] sm:$0xff]
    %v1346 = vld [vmem:[%s1344 + $0x8] sm:$0xff]
    %v1347 = vunpack.c.l.bf16 %v1345
    %v1348 = vunpack.c.h.bf16 %v1345
    %v1349 = vunpack.c.l.bf16 %v1346
    %v1350 = vunpack.c.h.bf16 %v1346
    %v1351 = vpack.c.bf16 %v1336, %v1336
    %1352 = vmatprep.subr.bf16.mxu0 %v575
    %1353 = vmatpush1.bf16.msra.mxu0 %v574
    %1354 = vmatprep.subr.bf16.mxu0 %v579
    %1355 = vmatpush1.bf16.msra.mxu0 %v578
    %1356 = vmatprep.subr.bf16.mxu0 %v583
    %1357 = vmatpush1.bf16.msra.mxu0 %v582
    %1358 = vmatprep.subr.bf16.mxu0 %v587
    %1359 = vmatpush1.bf16.msra.mxu0 %v586
    %1360 = vmatprep.subr.bf16.mxu0 %v591
    %1361 = vmatpush1.bf16.msra.mxu0 %v590
    %1362 = vmatprep.subr.bf16.mxu0 %v595
    %1363 = vmatpush1.bf16.msra.mxu0 %v594
    %1364 = vmatprep.subr.bf16.mxu0 %v599
    %1365 = vmatpush1.bf16.msra.mxu0 %v598
    %1366 = vmatprep.subr.bf16.mxu0 %v603
    %1367 = vmatpush1.bf16.msra.mxu0 %v602
    %1368 = vmatprep.subr.bf16.mxu0 0
    %1369 = vmatpush1.bf16.msra.mxu0 0
    %1370 = vmatprep.subr.bf16.mxu0 0
    %1371 = vmatpush1.bf16.msra.mxu0 0
    %1372 = vmatprep.subr.bf16.mxu0 0
    %1373 = vmatpush1.bf16.msra.mxu0 0
    %1374 = vmatprep.subr.bf16.mxu0 0
    %1375 = vmatpush1.bf16.msra.mxu0 0
    %1376 = vmatprep.subr.bf16.mxu0 0
    %1377 = vmatpush1.bf16.msra.mxu0 0
    %1378 = vmatprep.subr.bf16.mxu0 0
    %1379 = vmatpush1.bf16.msra.mxu0 0
    %1380 = vmatprep.subr.bf16.mxu0 0
    %1381 = vmatpush1.bf16.msra.mxu0 0
    %1382 = vmatprep.subr.bf16.mxu0 0
    %1383 = vmatpush1.bf16.msra.mxu0 0
    %1384 = vmatprep.mubr.bf16.mxu0 0
    %1385 = vmatmul.mubr.bf16.gmra.mrb[0].mxu0 %v1351
    %v1386 = vpop.f32.mrb[0].mxu0
    %v1387 = vadd.f32 0.0, %v1386
    %v1388 = vpop.f32.mrb[0].mxu0
    %v1389 = vadd.f32 0.0, %v1388
    %v1390 = vpop.f32.mrb[0].mxu0
    %v1391 = vpop.f32.mrb[0].mxu0
    %1392 = vdwg.mxu0
    %1393 = vmatprep.subr.bf16.mxu0 %v577
    %1394 = vmatpush1.bf16.msra.mxu0 %v576
    %1395 = vmatprep.subr.bf16.mxu0 %v581
    %1396 = vmatpush1.bf16.msra.mxu0 %v580
    %1397 = vmatprep.subr.bf16.mxu0 %v585
    %1398 = vmatpush1.bf16.msra.mxu0 %v584
    %1399 = vmatprep.subr.bf16.mxu0 %v589
    %1400 = vmatpush1.bf16.msra.mxu0 %v588
    %1401 = vmatprep.subr.bf16.mxu0 %v593
    %1402 = vmatpush1.bf16.msra.mxu0 %v592
    %1403 = vmatprep.subr.bf16.mxu0 %v597
    %1404 = vmatpush1.bf16.msra.mxu0 %v596
    %1405 = vmatprep.subr.bf16.mxu0 %v601
    %1406 = vmatpush1.bf16.msra.mxu0 %v600
    %1407 = vmatprep.subr.bf16.mxu0 %v605
    %1408 = vmatpush1.bf16.msra.mxu0 %v604
    %1409 = vmatprep.subr.bf16.mxu0 0
    %1410 = vmatpush1.bf16.msra.mxu0 0
    %1411 = vmatprep.subr.bf16.mxu0 0
    %1412 = vmatpush1.bf16.msra.mxu0 0
    %1413 = vmatprep.subr.bf16.mxu0 0
    %1414 = vmatpush1.bf16.msra.mxu0 0
    %1415 = vmatprep.subr.bf16.mxu0 0
    %1416 = vmatpush1.bf16.msra.mxu0 0
    %1417 = vmatprep.subr.bf16.mxu0 0
    %1418 = vmatpush1.bf16.msra.mxu0 0
    %1419 = vmatprep.subr.bf16.mxu0 0
    %1420 = vmatpush1.bf16.msra.mxu0 0
    %1421 = vmatprep.subr.bf16.mxu0 0
    %1422 = vmatpush1.bf16.msra.mxu0 0
    %1423 = vmatprep.subr.bf16.mxu0 0
    %1424 = vmatpush1.bf16.msra.mxu0 0
    %1425 = vmatprep.mubr.bf16.mxu0 0
    %1426 = vmatmul.mubr.bf16.gmra.mrb[0].mxu0 %v1351
    %v1427 = vpop.f32.mrb[0].mxu0
    %v1428 = vadd.f32 0.0, %v1427
    %v1429 = vpop.f32.mrb[0].mxu0
    %v1430 = vadd.f32 0.0, %v1429
    %v1431 = vpop.f32.mrb[0].mxu0
    %v1432 = vpop.f32.mrb[0].mxu0
    %1433 = vdwg.mxu0
    %v1434 = vadd.f32 %v1347, %v1387
    %v1435 = vadd.f32 %v1348, %v1389
    %v1436 = vadd.f32 %v1349, %v1428
    %v1437 = vadd.f32 %v1350, %v1430
    %v1438 = vmul.f32 %v1434, 0.5
    %v1439 = vtanh.pop %v1438
    %v1440 = vmul.f32 %v1439, 0.5
    %v1441 = vadd.f32 %v1440, 0.5
    %v1442 = vmul.f32 %v1435, 0.5
    %v1443 = vtanh.pop %v1442
    %v1444 = vmul.f32 %v1443, 0.5
    %v1445 = vadd.f32 %v1444, 0.5
    %v1446 = vtanh.pop %v1436
    %v1447 = vmul.f32 %v1437, 0.5
    %v1448 = vtanh.pop %v1447
    %v1449 = vmul.f32 %v1448, 0.5
    %v1450 = vadd.f32 %v1449, 0.5
    %v1451 = vmul.f32 %v1445, %v1334
    %v1452 = vmul.f32 %v1441, %v1446
    %v1453 = vadd.f32 %v1451, %v1452
    %v1454 = vtanh.pop %v1453
    %v1455 = vmul.f32 %v1450, %v1454
    %vm1456 = vcmp.eq.s32.totalorder %v436, 6
    %v1457 = vsel %vm1456, 1, 0
    %1458 = vset.pattern.permute.xlu0 0
    %1459 = vperm.xlu0 %1458, %v1457
    %v1460 = vpop.permute.xlu0 %1459
    %vm1461 = vcmp.eq.s32.totalorder %v1460, 1
    %v1462 = vsel %vm1461, %v1455, %v1343
    %s1463 = scalar_lea.vmem [#allocation2], 112
    %v1464 = vld [vmem:[%s1463] sm:$0xff]
    %v1465 = vld [vmem:[%s1463 + $0x8] sm:$0xff]
    %v1466 = vunpack.c.l.bf16 %v1464
    %v1467 = vunpack.c.h.bf16 %v1464
    %v1468 = vunpack.c.l.bf16 %v1465
    %v1469 = vunpack.c.h.bf16 %v1465
    %v1470 = vpack.c.bf16 %v1455, %v1455
    %1471 = vmatprep.subr.bf16.mxu0 %v575
    %1472 = vmatpush1.bf16.msra.mxu0 %v574
    %1473 = vmatprep.subr.bf16.mxu0 %v579
    %1474 = vmatpush1.bf16.msra.mxu0 %v578
    %1475 = vmatprep.subr.bf16.mxu0 %v583
    %1476 = vmatpush1.bf16.msra.mxu0 %v582
    %1477 = vmatprep.subr.bf16.mxu0 %v587
    %1478 = vmatpush1.bf16.msra.mxu0 %v586
    %1479 = vmatprep.subr.bf16.mxu0 %v591
    %1480 = vmatpush1.bf16.msra.mxu0 %v590
    %1481 = vmatprep.subr.bf16.mxu0 %v595
    %1482 = vmatpush1.bf16.msra.mxu0 %v594
    %1483 = vmatprep.subr.bf16.mxu0 %v599
    %1484 = vmatpush1.bf16.msra.mxu0 %v598
    %1485 = vmatprep.subr.bf16.mxu0 %v603
    %1486 = vmatpush1.bf16.msra.mxu0 %v602
    %1487 = vmatprep.subr.bf16.mxu0 0
    %1488 = vmatpush1.bf16.msra.mxu0 0
    %1489 = vmatprep.subr.bf16.mxu0 0
    %1490 = vmatpush1.bf16.msra.mxu0 0
    %1491 = vmatprep.subr.bf16.mxu0 0
    %1492 = vmatpush1.bf16.msra.mxu0 0
    %1493 = vmatprep.subr.bf16.mxu0 0
    %1494 = vmatpush1.bf16.msra.mxu0 0
    %1495 = vmatprep.subr.bf16.mxu0 0
    %1496 = vmatpush1.bf16.msra.mxu0 0
    %1497 = vmatprep.subr.bf16.mxu0 0
    %1498 = vmatpush1.bf16.msra.mxu0 0
    %1499 = vmatprep.subr.bf16.mxu0 0
    %1500 = vmatpush1.bf16.msra.mxu0 0
    %1501 = vmatprep.subr.bf16.mxu0 0
    %1502 = vmatpush1.bf16.msra.mxu0 0
    %1503 = vmatprep.mubr.bf16.mxu0 0
    %1504 = vmatmul.mubr.bf16.gmra.mrb[0].mxu0 %v1470
    %v1505 = vpop.f32.mrb[0].mxu0
    %v1506 = vadd.f32 0.0, %v1505
    %v1507 = vpop.f32.mrb[0].mxu0
    %v1508 = vadd.f32 0.0, %v1507
    %v1509 = vpop.f32.mrb[0].mxu0
    %v1510 = vpop.f32.mrb[0].mxu0
    %1511 = vdwg.mxu0
    %1512 = vmatprep.subr.bf16.mxu0 %v577
    %1513 = vmatpush1.bf16.msra.mxu0 %v576
    %1514 = vmatprep.subr.bf16.mxu0 %v581
    %1515 = vmatpush1.bf16.msra.mxu0 %v580
    %1516 = vmatprep.subr.bf16.mxu0 %v585
    %1517 = vmatpush1.bf16.msra.mxu0 %v584
    %1518 = vmatprep.subr.bf16.mxu0 %v589
    %1519 = vmatpush1.bf16.msra.mxu0 %v588
    %1520 = vmatprep.subr.bf16.mxu0 %v593
    %1521 = vmatpush1.bf16.msra.mxu0 %v592
    %1522 = vmatprep.subr.bf16.mxu0 %v597
    %1523 = vmatpush1.bf16.msra.mxu0 %v596
    %1524 = vmatprep.subr.bf16.mxu0 %v601
    %1525 = vmatpush1.bf16.msra.mxu0 %v600
    %1526 = vmatprep.subr.bf16.mxu0 %v605
    %1527 = vmatpush1.bf16.msra.mxu0 %v604
    %1528 = vmatprep.subr.bf16.mxu0 0
    %1529 = vmatpush1.bf16.msra.mxu0 0
    %1530 = vmatprep.subr.bf16.mxu0 0
    %1531 = vmatpush1.bf16.msra.mxu0 0
    %1532 = vmatprep.subr.bf16.mxu0 0
    %1533 = vmatpush1.bf16.msra.mxu0 0
    %1534 = vmatprep.subr.bf16.mxu0 0
    %1535 = vmatpush1.bf16.msra.mxu0 0
    %1536 = vmatprep.subr.bf16.mxu0 0
    %1537 = vmatpush1.bf16.msra.mxu0 0
    %1538 = vmatprep.subr.bf16.mxu0 0
    %1539 = vmatpush1.bf16.msra.mxu0 0
    %1540 = vmatprep.subr.bf16.mxu0 0
    %1541 = vmatpush1.bf16.msra.mxu0 0
    %1542 = vmatprep.subr.bf16.mxu0 0
    %1543 = vmatpush1.bf16.msra.mxu0 0
    %1544 = vmatprep.mubr.bf16.mxu0 0
    %1545 = vmatmul.mubr.bf16.gmra.mrb[0].mxu0 %v1470
    %v1546 = vpop.f32.mrb[0].mxu0
    %v1547 = vadd.f32 0.0, %v1546
    %v1548 = vpop.f32.mrb[0].mxu0
    %v1549 = vadd.f32 0.0, %v1548
    %v1550 = vpop.f32.mrb[0].mxu0
    %v1551 = vpop.f32.mrb[0].mxu0
    %1552 = vdwg.mxu0
    %v1553 = vadd.f32 %v1466, %v1506
    %v1554 = vadd.f32 %v1467, %v1508
    %v1555 = vadd.f32 %v1468, %v1547
    %v1556 = vadd.f32 %v1469, %v1549
    %v1557 = vmul.f32 %v1553, 0.5
    %v1558 = vtanh.pop %v1557
    %v1559 = vmul.f32 %v1558, 0.5
    %v1560 = vadd.f32 %v1559, 0.5
    %v1561 = vmul.f32 %v1554, 0.5
    %v1562 = vtanh.pop %v1561
    %v1563 = vmul.f32 %v1562, 0.5
    %v1564 = vadd.f32 %v1563, 0.5
    %v1565 = vtanh.pop %v1555
    %v1566 = vmul.f32 %v1556, 0.5
    %v1567 = vtanh.pop %v1566
    %v1568 = vmul.f32 %v1567, 0.5
    %v1569 = vadd.f32 %v1568, 0.5
    %v1570 = vmul.f32 %v1564, %v1453
    %v1571 = vmul.f32 %v1560, %v1565
    %v1572 = vadd.f32 %v1570, %v1571
    %v1573 = vtanh.pop %v1572
    %v1574 = vmul.f32 %v1569, %v1573
    %vm1575 = vcmp.eq.s32.totalorder %v436, 7
    %v1576 = vsel %vm1575, 1, 0
    %1577 = vset.pattern.permute.xlu0 0
    %1578 = vperm.xlu0 %1577, %v1576
    %v1579 = vpop.permute.xlu0 %1578
    %vm1580 = vcmp.eq.s32.totalorder %v1579, 1
    %v1581 = vsel %vm1580, %v1574, %v1462
    %v1582 = vld [vmem:[%s5] sm:$0x1]
    %v1584 = vlaneseq
    %v1585 = vshrl.u32 %v1584, 7
    %v1586 = vsub.s32 0, %v1585
    %v1587 = vrot.slane %v1582, %v1586
    %v1589 = vmul.f32 %v1581, %v1587
    %1590 = vadd.xlane.f32.xlu0 %v1589
    %v1591 = vpop.xlane.xlu0 %1590
    %v1592 = vld [vmem:[#allocation3] sm:$0x1]
    %v1594 = vlaneseq
    %v1595 = vshrl.u32 %v1594, 7
    %v1596 = vsub.s32 0, %v1595
    %v1597 = vrot.slane %v1592, %v1596
    %v1599 = vadd.f32 %v1591, %v1597
    %vm1600 = vcmask 7168
    %1601 = vst.msk [vmem:[%s9] sm:$0xff] %vm1600, %v1599
    // Predicated region
    $region50: #{tpu_custom_call.1} parent=1 // pred_check
      _
    $region51: #{tpu_custom_call.1} parent=1 // pred_check_branch
      %1603 = sbr.rel (0) target = $region53
    $region52: #{tpu_custom_call.1} parent=1 // pred_region
      _
    $region53: #{tpu_custom_call.1} parent=1 // pred_fallthru
      _
    // Predicated region
    $region54: #{tpu_custom_call.1} parent=1 // pred_check
      _
    $region55: #{tpu_custom_call.1} parent=1 // pred_check_branch
      %1605 = sbr.rel (0) target = $region57
    $region56: #{tpu_custom_call.1} parent=1 // pred_region
      _
    $region57: #{tpu_custom_call.1} parent=1 // pred_fallthru
      _
    %1606 = vsyncpa [#allocation5], 1
    %1607 = vsyncpa [#allocation7], 1

</llo_original>
